<compile_context>
chip_gen: v7x
topology: tpu7x:2x2x1
jax: 0.10.0
libtpu: 0.0.40
codegen_flags: <defaults>
</compile_context>

<pallas_src>
import functools

import jax
import jax.numpy as jnp
from jax.experimental import pallas as pl
from jax.experimental.pallas import tpu as pltpu


def _mu_estimator_kernel(x_ref, wc_ref, wm_ref, b_ref, o_ref, acc_ref, *,
                         c_in, out_nc, tile_n, n_spatial, has_tail, inv_n):
    """One (batch, spatial-tile) grid step of the fused Mu_Estimator forward.

    x_ref  : (1, c_in, tile_n) bf16  lane-dense spatial tile of the input
    wc_ref : (C, c_in)         f32   1x1x1 conv weight
    wm_ref : (3, C, C)         f32   stacked MLP weights (w_mlp3 row-padded)
    b_ref  : (C, 4)            f32   biases: [conv, mlp1, mlp2, mlp3(padded)]
    o_ref  : (1, 1, out_nc)    f32   final per-batch output
    acc_ref: (C, 128)          f32   running per-lane partial pool sums
    """
    k = pl.program_id(1)

    @pl.when(k == 0)
    def _init():
        acc_ref[...] = jnp.zeros_like(acc_ref)

    # ---- 1x1x1 conv + bias + ReLU on this spatial tile, on the VPU ---------
    xf = x_ref[0].astype(jnp.float32)              # (c_in, tile_n) f32
    wc = wc_ref[...]                               # (C, c_in)
    y = wc[:, 0:1] * xf[0:1, :]                    # (C,1)*(1,tile_n)->(C,tile_n)
    for i in range(1, c_in):
        y = y + wc[:, i:i + 1] * xf[i:i + 1, :]
    y = jnp.maximum(y + b_ref[:, 0:1], 0.0)

    # Mask out-of-range voxels of the (possibly partial) last tile so they
    # contribute nothing to the pooled mean.
    if has_tail:
        lane = jax.lax.broadcasted_iota(jnp.int32, (1, tile_n), 1)
        valid = (k * tile_n + lane) < n_spatial
        y = jnp.where(valid, y, 0.0)

    # ---- per-lane partial pool sums (VPU adds over 128-lane chunks) --------
    nfull = tile_n // 128
    rem = tile_n - nfull * 128
    if nfull > 0:
        part = y[:, 0:128]
        for j in range(1, nfull):
            part = part + y[:, j * 128:(j + 1) * 128]
        acc_ref[...] += part
    if rem > 0:  # only when tile_n == N and N is not a multiple of 128
        acc_ref[:, :rem] += y[:, nfull * 128:]

    # ---- last spatial tile: finish the pool, run the tiny MLP + Softplus ---
    @pl.when(k == pl.num_programs(1) - 1)
    def _finalize():
        pooled = jnp.sum(acc_ref[...], axis=-1, keepdims=True) * inv_n  # (C,1)
        z = jnp.dot(wm_ref[0], pooled, preferred_element_type=jnp.float32)
        z = jnp.maximum(z + b_ref[:, 1:2], 0.0)
        z = jnp.dot(wm_ref[1], z, preferred_element_type=jnp.float32)
        z = jnp.maximum(z + b_ref[:, 2:3], 0.0)
        z = jnp.dot(wm_ref[2], z, preferred_element_type=jnp.float32)
        z = (z + b_ref[:, 3:4])[:out_nc, :]                            # (out_nc,1)
        # numerically stable softplus (matches torch.nn.Softplus, beta=1)
        sp = jnp.maximum(z, 0.0) + jnp.log(1.0 + jnp.exp(-jnp.abs(z)))
        o_ref[...] = (sp + 1e-6).reshape(o_ref.shape).astype(o_ref.dtype)


def _choose_tile_n(n, max_tile_n):
    """Fixed lane-dense tile: min(n, max multiple-of-128 cap)."""
    cap = max(128, (max_tile_n // 128) * 128)
    return n if n <= cap else cap


def _pack_params(params, channel, out_nc):
    """Pack the 8 tiny parameter tensors into 3 operands."""
    wm = jnp.zeros((3, channel, channel), jnp.float32)
    wm = wm.at[0].set(params["w_mlp1"].astype(jnp.float32))
    wm = wm.at[1].set(params["w_mlp2"].astype(jnp.float32))
    wm = wm.at[2, :out_nc, :].set(params["w_mlp3"].astype(jnp.float32))
    bs = jnp.zeros((channel, 4), jnp.float32)
    bs = bs.at[:, 0].set(params["b_conv"].astype(jnp.float32))
    bs = bs.at[:, 1].set(params["b_mlp1"].astype(jnp.float32))
    bs = bs.at[:, 2].set(params["b_mlp2"].astype(jnp.float32))
    bs = bs.at[:out_nc, 3].set(params["b_mlp3"].astype(jnp.float32))
    return params["w_conv"].astype(jnp.float32), wm, bs


def mu_estimator(x, params, *, max_tile_n=8192):
    """x: (b, in_nc, D, H, W) float32. Returns (b, out_nc, 1, 1, 1) float32."""
    b, c_in, D, H, W = x.shape
    channel = params["w_mlp1"].shape[0]
    out_nc = params["w_mlp3"].shape[0]
    n_spatial = D * H * W

    # Lane-dense bf16 stream: spatial on lanes, channels on sublanes.
    x_flat = x.reshape(b, c_in, n_spatial).astype(jnp.bfloat16)
    w_conv, w_mlp, b_all = _pack_params(params, channel, out_nc)

    tile_n = _choose_tile_n(n_spatial, max_tile_n)
    num_k = pl.cdiv(n_spatial, tile_n)
    has_tail = (n_spatial % tile_n) != 0

    kernel = functools.partial(
        _mu_estimator_kernel, c_in=c_in, out_nc=out_nc, tile_n=tile_n,
        n_spatial=n_spatial, has_tail=has_tail, inv_n=1.0 / n_spatial)

    out = pl.pallas_call(
        kernel,
        out_shape=jax.ShapeDtypeStruct((b, 1, out_nc), jnp.float32),
        grid_spec=pltpu.PrefetchScalarGridSpec(
            num_scalar_prefetch=0,
            grid=(b, num_k),
            in_specs=[
                pl.BlockSpec((1, c_in, tile_n), lambda i, k: (i, 0, k)),
                pl.BlockSpec((channel, c_in), lambda i, k: (0, 0)),
                pl.BlockSpec((3, channel, channel), lambda i, k: (0, 0, 0)),
                pl.BlockSpec((channel, 4), lambda i, k: (0, 0)),
            ],
            out_specs=pl.BlockSpec((1, 1, out_nc), lambda i, k: (i, 0, 0)),
            scratch_shapes=[pltpu.VMEM((channel, 128), jnp.float32)],
        ),
        compiler_params=pltpu.CompilerParams(
            dimension_semantics=("parallel", "arbitrary")),
    )(x_flat, w_conv, w_mlp, b_all)

    return out.reshape(b, out_nc, 1, 1, 1)


def reference_mu_estimator(x, params):
    """Pure-JAX f32 reference mirroring the PyTorch forward exactly."""
    b = x.shape[0]
    y = jnp.einsum("bcdhw,oc->bodhw", x, params["w_conv"])
    y = y + params["b_conv"][None, :, None, None, None]
    y = jnp.maximum(y, 0.0)                                  # conv + ReLU
    p = jnp.mean(y, axis=(2, 3, 4))                          # AdaptiveAvgPool3d(1)
    z = jnp.maximum(p @ params["w_mlp1"].T + params["b_mlp1"], 0.0)
    z = jnp.maximum(z @ params["w_mlp2"].T + params["b_mlp2"], 0.0)
    z = z @ params["w_mlp3"].T + params["b_mlp3"]
    z = jax.nn.softplus(z) + 1e-6
    return z.reshape(b, -1, 1, 1, 1)


def init_params(key, *, in_nc, channel, out_nc):
    """Deterministic synthetic parameters (all 1x1x1 convs have bias)."""
    ks = jax.random.split(key, 8)
    s_in = 1.0 / jnp.sqrt(in_nc)
    s_ch = 1.0 / jnp.sqrt(channel)
    u = jax.random.uniform
    return {
        "w_conv": u(ks[0], (channel, in_nc), jnp.float32, -s_in, s_in),
        "b_conv": u(ks[1], (channel,), jnp.float32, -s_in, s_in),
        "w_mlp1": u(ks[2], (channel, channel), jnp.float32, -s_ch, s_ch),
        "b_mlp1": u(ks[3], (channel,), jnp.float32, -s_ch, s_ch),
        "w_mlp2": u(ks[4], (channel, channel), jnp.float32, -s_ch, s_ch),
        "b_mlp2": u(ks[5], (channel,), jnp.float32, -s_ch, s_ch),
        "w_mlp3": u(ks[6], (out_nc, channel), jnp.float32, -s_ch, s_ch),
        "b_mlp3": u(ks[7], (out_nc,), jnp.float32, -s_ch, s_ch),
    }


if __name__ == "__main__":
    # shapes consistent with the module: in_nc=8, channel=8, out_nc=1
    # input x: (b, in_nc, D, H, W) = (2, 8, 8, 16, 16) -> N = 2048 voxels
    in_nc, channel, out_nc = 8, 8, 1
    b, D, H, W = 2, 8, 16, 16

    key = jax.random.PRNGKey(0)
    kx, kp, kx2 = jax.random.split(key, 3)
    x = jax.random.normal(kx, (b, in_nc, D, H, W), jnp.float32)
    params = init_params(kp, in_nc=in_nc, channel=channel, out_nc=out_nc)

    ref = reference_mu_estimator(x, params)
    # Tolerances loosened vs the f32 reference because x is streamed as bf16
    # (pool / MLP accumulation stays f32).
    atol, rtol = 1e-2, 2e-2

    # single-tile path (N = 2048 <= default tile)
    out = jax.block_until_ready(mu_estimator(x, params))
    assert out.shape == (b, out_nc, 1, 1, 1)
    assert jnp.allclose(out, ref, atol=atol, rtol=rtol), (
        "Pallas kernel mismatch vs reference (single-tile path)")

    # multi-tile spatial reduction / accumulator path (tile = 512, 4 tiles)
    out_mt = jax.block_until_ready(mu_estimator(x, params, max_tile_n=512))
    assert jnp.allclose(out_mt, ref, atol=atol, rtol=rtol), (
        "Pallas kernel mismatch vs reference (multi-tile path)")

    # ceil-div grid with a masked partial last tile (N = 700, tile = 512)
    x2 = jax.random.normal(kx2, (1, in_nc, 7, 10, 10), jnp.float32)
    ref2 = reference_mu_estimator(x2, params)
    out2 = jax.block_until_ready(mu_estimator(x2, params, max_tile_n=512))
    assert jnp.allclose(out2, ref2, atol=atol, rtol=rtol), (
        "Pallas kernel mismatch vs reference (masked-tail path)")

    print("KERNEL_OK")
</pallas_src>

<mosaic_0001>
module attributes {stable_mosaic.version = 11 : i64} {
  func.func @_mu_estimator_kernel(%arg0: i32, %arg1: i32, %arg2: memref<1x8x2048xbf16, #tpu.memory_space<vmem>>, %arg3: memref<8x8xf32, #tpu.memory_space<vmem>>, %arg4: memref<3x8x8xf32, #tpu.memory_space<vmem>>, %arg5: memref<8x4xf32, #tpu.memory_space<vmem>>, %arg6: memref<1x1x1xf32, #tpu.memory_space<vmem>>, %arg7: memref<8x128xf32, #tpu.memory_space<vmem>>) attributes {dimension_semantics = [#tpu.dimension_semantics<parallel>, #tpu.dimension_semantics<arbitrary>], iteration_bounds = array<i64: 2, 1>, scalar_prefetch = 0 : i64, scratch_operands = 1 : i64, tpu.core_type = #tpu.core_type<tc>, window_params = [{transform_indices = @transform_0, window_bounds = array<i64: 1, 8, 2048>}, {pipeline_mode = #tpu.pipeline_mode<synchronous>, transform_indices = @transform_1, window_bounds = array<i64: 8, 8>}, {pipeline_mode = #tpu.pipeline_mode<synchronous>, transform_indices = @transform_2, window_bounds = array<i64: 3, 8, 8>}, {pipeline_mode = #tpu.pipeline_mode<synchronous>, transform_indices = @transform_3, window_bounds = array<i64: 8, 4>}, {transform_indices = @transform_4, window_bounds = array<i64: 1, 1, 1>}]} {
    %c0_i32 = arith.constant 0 : i32
    %0 = arith.cmpi eq, %arg1, %c0_i32 : i32
    %1 = arith.extui %0 : i1 to i32
    %c0_i32_0 = arith.constant 0 : i32
    %2 = arith.cmpi ne, %1, %c0_i32_0 : i32
    scf.if %2 {
      %cst_13 = arith.constant 0.000000e+00 : f32
      %96 = vector.broadcast %cst_13 : f32 to vector<8x128xf32>
      %c0_14 = arith.constant 0 : index
      %c0_15 = arith.constant 0 : index
      %97 = vector.load %arg7[%c0_14, %c0_15] : memref<8x128xf32, #tpu.memory_space<vmem>>, vector<8x128xf32>
      tpu.vector_store %arg7[%c0_14, %c0_15], %96 {strides = array<i32>} : memref<8x128xf32, #tpu.memory_space<vmem>>, vector<8x128xf32>,
    } else {
    }
    %c0 = arith.constant 0 : index
    %c0_1 = arith.constant 0 : index
    %c0_2 = arith.constant 0 : index
    %3 = vector.load %arg2[%c0, %c0_1, %c0_2] : memref<1x8x2048xbf16, #tpu.memory_space<vmem>>, vector<1x8x2048xbf16>
    %4 = vector.shape_cast %3 : vector<1x8x2048xbf16> to vector<8x2048xbf16>
    %5 = arith.extf %4 : vector<8x2048xbf16> to vector<8x2048xf32>
    %c0_3 = arith.constant 0 : index
    %c0_4 = arith.constant 0 : index
    %6 = vector.load %arg3[%c0_3, %c0_4] : memref<8x8xf32, #tpu.memory_space<vmem>>, vector<8x8xf32>
    %7 = vector.extract_strided_slice %6 {offsets = [0, 0], sizes = [8, 1], strides = [1, 1]} : vector<8x8xf32> to vector<8x1xf32>
    %8 = vector.extract_strided_slice %5 {offsets = [0, 0], sizes = [1, 2048], strides = [1, 1]} : vector<8x2048xf32> to vector<1x2048xf32>
    %9 = vector.broadcast %7 : vector<8x1xf32> to vector<8x2048xf32>
    %10 = vector.broadcast %8 : vector<1x2048xf32> to vector<8x2048xf32>
    %11 = arith.mulf %9, %10 : vector<8x2048xf32>
    %12 = vector.extract_strided_slice %6 {offsets = [0, 1], sizes = [8, 1], strides = [1, 1]} : vector<8x8xf32> to vector<8x1xf32>
    %13 = vector.extract_strided_slice %5 {offsets = [1, 0], sizes = [1, 2048], strides = [1, 1]} : vector<8x2048xf32> to vector<1x2048xf32>
    %14 = vector.broadcast %12 : vector<8x1xf32> to vector<8x2048xf32>
    %15 = vector.broadcast %13 : vector<1x2048xf32> to vector<8x2048xf32>
    %16 = arith.mulf %14, %15 : vector<8x2048xf32>
    %17 = arith.addf %11, %16 : vector<8x2048xf32>
    %18 = vector.extract_strided_slice %6 {offsets = [0, 2], sizes = [8, 1], strides = [1, 1]} : vector<8x8xf32> to vector<8x1xf32>
    %19 = vector.extract_strided_slice %5 {offsets = [2, 0], sizes = [1, 2048], strides = [1, 1]} : vector<8x2048xf32> to vector<1x2048xf32>
    %20 = vector.broadcast %18 : vector<8x1xf32> to vector<8x2048xf32>
    %21 = vector.broadcast %19 : vector<1x2048xf32> to vector<8x2048xf32>
    %22 = arith.mulf %20, %21 : vector<8x2048xf32>
    %23 = arith.addf %17, %22 : vector<8x2048xf32>
    %24 = vector.extract_strided_slice %6 {offsets = [0, 3], sizes = [8, 1], strides = [1, 1]} : vector<8x8xf32> to vector<8x1xf32>
    %25 = vector.extract_strided_slice %5 {offsets = [3, 0], sizes = [1, 2048], strides = [1, 1]} : vector<8x2048xf32> to vector<1x2048xf32>
    %26 = vector.broadcast %24 : vector<8x1xf32> to vector<8x2048xf32>
    %27 = vector.broadcast %25 : vector<1x2048xf32> to vector<8x2048xf32>
    %28 = arith.mulf %26, %27 : vector<8x2048xf32>
    %29 = arith.addf %23, %28 : vector<8x2048xf32>
    %30 = vector.extract_strided_slice %6 {offsets = [0, 4], sizes = [8, 1], strides = [1, 1]} : vector<8x8xf32> to vector<8x1xf32>
    %31 = vector.extract_strided_slice %5 {offsets = [4, 0], sizes = [1, 2048], strides = [1, 1]} : vector<8x2048xf32> to vector<1x2048xf32>
    %32 = vector.broadcast %30 : vector<8x1xf32> to vector<8x2048xf32>
    %33 = vector.broadcast %31 : vector<1x2048xf32> to vector<8x2048xf32>
    %34 = arith.mulf %32, %33 : vector<8x2048xf32>
    %35 = arith.addf %29, %34 : vector<8x2048xf32>
    %36 = vector.extract_strided_slice %6 {offsets = [0, 5], sizes = [8, 1], strides = [1, 1]} : vector<8x8xf32> to vector<8x1xf32>
    %37 = vector.extract_strided_slice %5 {offsets = [5, 0], sizes = [1, 2048], strides = [1, 1]} : vector<8x2048xf32> to vector<1x2048xf32>
    %38 = vector.broadcast %36 : vector<8x1xf32> to vector<8x2048xf32>
    %39 = vector.broadcast %37 : vector<1x2048xf32> to vector<8x2048xf32>
    %40 = arith.mulf %38, %39 : vector<8x2048xf32>
    %41 = arith.addf %35, %40 : vector<8x2048xf32>
    %42 = vector.extract_strided_slice %6 {offsets = [0, 6], sizes = [8, 1], strides = [1, 1]} : vector<8x8xf32> to vector<8x1xf32>
    %43 = vector.extract_strided_slice %5 {offsets = [6, 0], sizes = [1, 2048], strides = [1, 1]} : vector<8x2048xf32> to vector<1x2048xf32>
    %44 = vector.broadcast %42 : vector<8x1xf32> to vector<8x2048xf32>
    %45 = vector.broadcast %43 : vector<1x2048xf32> to vector<8x2048xf32>
    %46 = arith.mulf %44, %45 : vector<8x2048xf32>
    %47 = arith.addf %41, %46 : vector<8x2048xf32>
    %48 = vector.extract_strided_slice %6 {offsets = [0, 7], sizes = [8, 1], strides = [1, 1]} : vector<8x8xf32> to vector<8x1xf32>
    %49 = vector.extract_strided_slice %5 {offsets = [7, 0], sizes = [1, 2048], strides = [1, 1]} : vector<8x2048xf32> to vector<1x2048xf32>
    %50 = vector.broadcast %48 : vector<8x1xf32> to vector<8x2048xf32>
    %51 = vector.broadcast %49 : vector<1x2048xf32> to vector<8x2048xf32>
    %52 = arith.mulf %50, %51 : vector<8x2048xf32>
    %53 = arith.addf %47, %52 : vector<8x2048xf32>
    %c0_5 = arith.constant 0 : index
    %c0_6 = arith.constant 0 : index
    %54 = vector.load %arg5[%c0_5, %c0_6] : memref<8x4xf32, #tpu.memory_space<vmem>>, vector<8x1xf32>
    %55 = vector.broadcast %54 : vector<8x1xf32> to vector<8x2048xf32>
    %56 = arith.addf %53, %55 : vector<8x2048xf32>
    %cst = arith.constant 0.000000e+00 : f32
    %57 = vector.broadcast %cst : f32 to vector<8x2048xf32>
    %58 = arith.maximumf %56, %57 : vector<8x2048xf32>
    %59 = vector.extract_strided_slice %58 {offsets = [0, 0], sizes = [8, 128], strides = [1, 1]} : vector<8x2048xf32> to vector<8x128xf32>
    %60 = vector.extract_strided_slice %58 {offsets = [0, 128], sizes = [8, 128], strides = [1, 1]} : vector<8x2048xf32> to vector<8x128xf32>
    %61 = arith.addf %59, %60 : vector<8x128xf32>
    %62 = vector.extract_strided_slice %58 {offsets = [0, 256], sizes = [8, 128], strides = [1, 1]} : vector<8x2048xf32> to vector<8x128xf32>
    %63 = arith.addf %61, %62 : vector<8x128xf32>
    %64 = vector.extract_strided_slice %58 {offsets = [0, 384], sizes = [8, 128], strides = [1, 1]} : vector<8x2048xf32> to vector<8x128xf32>
    %65 = arith.addf %63, %64 : vector<8x128xf32>
    %66 = vector.extract_strided_slice %58 {offsets = [0, 512], sizes = [8, 128], strides = [1, 1]} : vector<8x2048xf32> to vector<8x128xf32>
    %67 = arith.addf %65, %66 : vector<8x128xf32>
    %68 = vector.extract_strided_slice %58 {offsets = [0, 640], sizes = [8, 128], strides = [1, 1]} : vector<8x2048xf32> to vector<8x128xf32>
    %69 = arith.addf %67, %68 : vector<8x128xf32>
    %70 = vector.extract_strided_slice %58 {offsets = [0, 768], sizes = [8, 128], strides = [1, 1]} : vector<8x2048xf32> to vector<8x128xf32>
    %71 = arith.addf %69, %70 : vector<8x128xf32>
    %72 = vector.extract_strided_slice %58 {offsets = [0, 896], sizes = [8, 128], strides = [1, 1]} : vector<8x2048xf32> to vector<8x128xf32>
    %73 = arith.addf %71, %72 : vector<8x128xf32>
    %74 = vector.extract_strided_slice %58 {offsets = [0, 1024], sizes = [8, 128], strides = [1, 1]} : vector<8x2048xf32> to vector<8x128xf32>
    %75 = arith.addf %73, %74 : vector<8x128xf32>
    %76 = vector.extract_strided_slice %58 {offsets = [0, 1152], sizes = [8, 128], strides = [1, 1]} : vector<8x2048xf32> to vector<8x128xf32>
    %77 = arith.addf %75, %76 : vector<8x128xf32>
    %78 = vector.extract_strided_slice %58 {offsets = [0, 1280], sizes = [8, 128], strides = [1, 1]} : vector<8x2048xf32> to vector<8x128xf32>
    %79 = arith.addf %77, %78 : vector<8x128xf32>
    %80 = vector.extract_strided_slice %58 {offsets = [0, 1408], sizes = [8, 128], strides = [1, 1]} : vector<8x2048xf32> to vector<8x128xf32>
    %81 = arith.addf %79, %80 : vector<8x128xf32>
    %82 = vector.extract_strided_slice %58 {offsets = [0, 1536], sizes = [8, 128], strides = [1, 1]} : vector<8x2048xf32> to vector<8x128xf32>
    %83 = arith.addf %81, %82 : vector<8x128xf32>
    %84 = vector.extract_strided_slice %58 {offsets = [0, 1664], sizes = [8, 128], strides = [1, 1]} : vector<8x2048xf32> to vector<8x128xf32>
    %85 = arith.addf %83, %84 : vector<8x128xf32>
    %86 = vector.extract_strided_slice %58 {offsets = [0, 1792], sizes = [8, 128], strides = [1, 1]} : vector<8x2048xf32> to vector<8x128xf32>
    %87 = arith.addf %85, %86 : vector<8x128xf32>
    %88 = vector.extract_strided_slice %58 {offsets = [0, 1920], sizes = [8, 128], strides = [1, 1]} : vector<8x2048xf32> to vector<8x128xf32>
    %89 = arith.addf %87, %88 : vector<8x128xf32>
    %c0_7 = arith.constant 0 : index
    %c0_8 = arith.constant 0 : index
    %90 = vector.load %arg7[%c0_7, %c0_8] : memref<8x128xf32, #tpu.memory_space<vmem>>, vector<8x128xf32>
    %91 = arith.addf %90, %89 : vector<8x128xf32>
    %c0_9 = arith.constant 0 : index
    %c0_10 = arith.constant 0 : index
    %92 = vector.load %arg7[%c0_9, %c0_10] : memref<8x128xf32, #tpu.memory_space<vmem>>, vector<8x128xf32>
    tpu.vector_store %arg7[%c0_9, %c0_10], %91 {strides = array<i32>} : memref<8x128xf32, #tpu.memory_space<vmem>>, vector<8x128xf32>,
    %c0_i32_11 = arith.constant 0 : i32
    %93 = arith.cmpi eq, %arg1, %c0_i32_11 : i32
    %94 = arith.extui %93 : i1 to i32
    %c0_i32_12 = arith.constant 0 : i32
    %95 = arith.cmpi ne, %94, %c0_i32_12 : i32
    scf.if %95 {
      %c0_13 = arith.constant 0 : index
      %c0_14 = arith.constant 0 : index
      %96 = vector.load %arg7[%c0_13, %c0_14] : memref<8x128xf32, #tpu.memory_space<vmem>>, vector<8x128xf32>
      %cst_15 = arith.constant dense<0.000000e+00> : vector<8xf32>
      %97 = vector.multi_reduction <add>, %96, %cst_15 [1] : vector<8x128xf32> to vector<8xf32>
      %98 = vector.shape_cast %97 : vector<8xf32> to vector<8x1xf32>
      %cst_16 = arith.constant 4.8828125E-4 : f32
      %99 = vector.broadcast %cst_16 : f32 to vector<8x1xf32>
      %100 = arith.mulf %98, %99 : vector<8x1xf32>
      %c0_17 = arith.constant 0 : index
      %c0_18 = arith.constant 0 : index
      %c0_19 = arith.constant 0 : index
      %101 = vector.load %arg4[%c0_17, %c0_18, %c0_19] : memref<3x8x8xf32, #tpu.memory_space<vmem>>, vector<1x8x8xf32>
      %102 = vector.shape_cast %101 : vector<1x8x8xf32> to vector<8x8xf32>
      %cst_20 = arith.constant dense<0.000000e+00> : vector<8x1xf32>
      %103 = tpu.matmul %102, %100, %cst_20 {dimension_numbers = #tpu.dot_dimension_numbers<[1], [0], [0], [1], [0, 0, 1, 1], [], []>} : vector<8x8xf32>, vector<8x1xf32>, vector<8x1xf32> -> vector<8x1xf32>
      %c0_21 = arith.constant 0 : index
      %c1 = arith.constant 1 : index
      %104 = vector.load %arg5[%c0_21, %c1] : memref<8x4xf32, #tpu.memory_space<vmem>>, vector<8x1xf32>
      %105 = arith.addf %103, %104 : vector<8x1xf32>
      %cst_22 = arith.constant 0.000000e+00 : f32
      %106 = vector.broadcast %cst_22 : f32 to vector<8x1xf32>
      %107 = arith.maximumf %105, %106 : vector<8x1xf32>
      %c1_23 = arith.constant 1 : index
      %c0_24 = arith.constant 0 : index
      %c0_25 = arith.constant 0 : index
      %108 = vector.load %arg4[%c1_23, %c0_24, %c0_25] : memref<3x8x8xf32, #tpu.memory_space<vmem>>, vector<1x8x8xf32>
      %109 = vector.shape_cast %108 : vector<1x8x8xf32> to vector<8x8xf32>
      %cst_26 = arith.constant dense<0.000000e+00> : vector<8x1xf32>
      %110 = tpu.matmul %109, %107, %cst_26 {dimension_numbers = #tpu.dot_dimension_numbers<[1], [0], [0], [1], [0, 0, 1, 1], [], []>} : vector<8x8xf32>, vector<8x1xf32>, vector<8x1xf32> -> vector<8x1xf32>
      %c0_27 = arith.constant 0 : index
      %c2 = arith.constant 2 : index
      %111 = vector.load %arg5[%c0_27, %c2] : memref<8x4xf32, #tpu.memory_space<vmem>>, vector<8x1xf32>
      %112 = arith.addf %110, %111 : vector<8x1xf32>
      %cst_28 = arith.constant 0.000000e+00 : f32
      %113 = vector.broadcast %cst_28 : f32 to vector<8x1xf32>
      %114 = arith.maximumf %112, %113 : vector<8x1xf32>
      %c2_29 = arith.constant 2 : index
      %c0_30 = arith.constant 0 : index
      %c0_31 = arith.constant 0 : index
      %115 = vector.load %arg4[%c2_29, %c0_30, %c0_31] : memref<3x8x8xf32, #tpu.memory_space<vmem>>, vector<1x8x8xf32>
      %116 = vector.shape_cast %115 : vector<1x8x8xf32> to vector<8x8xf32>
      %cst_32 = arith.constant dense<0.000000e+00> : vector<8x1xf32>
      %117 = tpu.matmul %116, %114, %cst_32 {dimension_numbers = #tpu.dot_dimension_numbers<[1], [0], [0], [1], [0, 0, 1, 1], [], []>} : vector<8x8xf32>, vector<8x1xf32>, vector<8x1xf32> -> vector<8x1xf32>
      %c0_33 = arith.constant 0 : index
      %c3 = arith.constant 3 : index
      %118 = vector.load %arg5[%c0_33, %c3] : memref<8x4xf32, #tpu.memory_space<vmem>>, vector<8x1xf32>
      %119 = arith.addf %117, %118 : vector<8x1xf32>
      %120 = vector.extract_strided_slice %119 {offsets = [0, 0], sizes = [1, 1], strides = [1, 1]} : vector<8x1xf32> to vector<1x1xf32>
      %cst_34 = arith.constant 0.000000e+00 : f32
      %121 = vector.broadcast %cst_34 : f32 to vector<1x1xf32>
      %122 = arith.maximumf %120, %121 : vector<1x1xf32>
      %123 = math.absf %120 : vector<1x1xf32>
      %cst_35 = arith.constant 0.000000e+00 : f32
      %124 = vector.broadcast %cst_35 : f32 to vector<1x1xf32>
      %125 = arith.subf %124, %123 : vector<1x1xf32>
      %126 = math.exp %125 : vector<1x1xf32>
      %cst_36 = arith.constant 1.000000e+00 : f32
      %127 = vector.broadcast %cst_36 : f32 to vector<1x1xf32>
      %128 = arith.addf %127, %126 : vector<1x1xf32>
      %129 = math.log %128 : vector<1x1xf32>
      %130 = arith.addf %122, %129 : vector<1x1xf32>
      %cst_37 = arith.constant 9.99999997E-7 : f32
      %131 = vector.broadcast %cst_37 : f32 to vector<1x1xf32>
      %132 = arith.addf %130, %131 : vector<1x1xf32>
      %133 = vector.shape_cast %132 : vector<1x1xf32> to vector<1x1x1xf32>
      %c0_38 = arith.constant 0 : index
      %c0_39 = arith.constant 0 : index
      %c0_40 = arith.constant 0 : index
      %134 = vector.load %arg6[%c0_38, %c0_39, %c0_40] : memref<1x1x1xf32, #tpu.memory_space<vmem>>, vector<1x1x1xf32>
      tpu.vector_store %arg6[%c0_38, %c0_39, %c0_40], %133 {strides = array<i32>} : memref<1x1x1xf32, #tpu.memory_space<vmem>>, vector<1x1x1xf32>,
    } else {
    }
    return
  }
  func.func @transform_0(%arg0: i32, %arg1: i32) -> (i32, i32, i32) {
    %c0_i32 = arith.constant 0 : i32
    %c0_i32_0 = arith.constant 0 : i32
    return %arg0, %c0_i32, %arg1 : i32, i32, i32
  }
  func.func @transform_1(%arg0: i32, %arg1: i32) -> (i32, i32) {
    %c0_i32 = arith.constant 0 : i32
    %c0_i32_0 = arith.constant 0 : i32
    %c0_i32_1 = arith.constant 0 : i32
    return %c0_i32, %c0_i32_0 : i32, i32
  }
  func.func @transform_2(%arg0: i32, %arg1: i32) -> (i32, i32, i32) {
    %c0_i32 = arith.constant 0 : i32
    %c0_i32_0 = arith.constant 0 : i32
    %c0_i32_1 = arith.constant 0 : i32
    %c0_i32_2 = arith.constant 0 : i32
    return %c0_i32, %c0_i32_0, %c0_i32_1 : i32, i32, i32
  }
  func.func @transform_3(%arg0: i32, %arg1: i32) -> (i32, i32) {
    %c0_i32 = arith.constant 0 : i32
    %c0_i32_0 = arith.constant 0 : i32
    %c0_i32_1 = arith.constant 0 : i32
    return %c0_i32, %c0_i32_0 : i32, i32
  }
  func.func @transform_4(%arg0: i32, %arg1: i32) -> (i32, i32, i32) {
    %c0_i32 = arith.constant 0 : i32
    %c0_i32_0 = arith.constant 0 : i32
    %c0_i32_1 = arith.constant 0 : i32
    return %arg0, %c0_i32, %c0_i32_0 : i32, i32, i32
  }
}

</mosaic_0001>

<llo_original>
// kernel: tpu_custom_call.1
$region0: #{tpu_custom_call.1}
  #allocation0 [shape = 'u32[]', space=smem, size = 0x4, offset = 0x4, fixed_abs, tag = 'smem constant byte address 0x4 - core index']
  #allocation1 [shape = 'u32[144,128]{1,0:T(1,128)}', space=vmem, size = 0x12000, scoped, tag = 'internal scratch']
  #allocation2 [shape = 'f32[8,128]{1,0:T(8,128)}', space=vmem, size = 0x1000, scoped, tag = 'scratch operand']
  %s0 = inlined_call_operand.hbm [shape: bf16[2,8,2048], index: 0, kind: input, shape index: {}]
  %s1 = inlined_call_operand.vmem [shape: f32[8,8], index: 1, kind: input, shape index: {}]
  %s2 = inlined_call_operand.hbm [shape: f32[3,8,8], index: 2, kind: input, shape index: {}]
  %s3 = inlined_call_operand.vmem [shape: f32[8,4], index: 3, kind: input, shape index: {}]
  %s4 = inlined_call_operand.vmem [shape: f32[2,1,1], index: 4, kind: output, shape index: {}]
  %s5 = sld [smem:[#allocation0]]
  $region65: #{tpu_custom_call.1} parent=0
    _
  %s7 = ssub.s32 1, %s5
  %s8 = scalar_select 0, %s7, %s5
  $region1: #{tpu_custom_call.1} parent=0
    #allocation3 [shape = 'u8[65536]{0}', space=vmem, size = 0x10000, scoped, tag = 'input window, operand 0']
    #allocation4 [shape = 's32[2]{0}', space=sflag, size = 0x8, scoped, tag = 'scoped memory for tpu_custom_call.1']
    #allocation5 [shape = 'u8[12288]{0}', space=vmem, size = 0x3000, scoped, tag = 'input window, operand 2, single buffered']
    #allocation6 [shape = 's32[1]{0}', space=sflag, size = 0x4, scoped, tag = 'scoped memory for tpu_custom_call.1']
    %9 = vsyncpa [#allocation4], 0
    %s10 = scalar_lea.sflag [#allocation4], 1
    %11 = vsyncpa %s10, 0
    %12 = vsyncpa [#allocation6], 0
    loop: start=0, step=1, limit=4
    $region2: #{tpu_custom_call.1} parent=1 // loop_pre_header
      _
    $region3: #{tpu_custom_call.1} parent=1 // loop_header
      %s14 = sphi 0, %s18
      %p15 = scmp.ge.s32.totalorder %s14, 4
      %s21 = sphi 0, %s33
      %s22 = sphi 0, %s29
      %s23 = sphi 0, %s21
      %s24 = sphi 0, %s22
      %s25 = sphi 0, %s23
      %s26 = sphi 0, %s24
      %s38 = sphi 0, %s40
      %s41 = sphi 0, %s38
      %s42 = sphi 0, %s41
      %s58 = sphi 0, %s42
      %s62 = sphi 0, %s62
      %s64 = sphi 0, %s62
      %s65 = sphi 0, %s64
      %s79 = sphi 0, %s65
      %s83 = sphi 0, %s83
      %s85 = sphi 0, %s83
      %s86 = sphi 0, %s85
      %s100 = sphi 0, %s86
      %s104 = sphi 0, %s104
      %s106 = sphi 0, %s104
      %s107 = sphi 0, %s106
      %s121 = sphi 0, %s107
      %s127 = sphi 0, %s129
      %s130 = sphi 0, %s127
      %s131 = sphi 0, %s130
      %s147 = sphi 0, %s131
    $region4: #{tpu_custom_call.1} parent=1 // loop_header_branch
      %17 = sbr.rel (%p15) target = $region8
    $region5: #{tpu_custom_call.1} parent=1 // loop_body
      %s19 = ssub.s32 %s14, 1
      %s20 = ssub.s32 %s14, 2
      %s27 = sadd.s32 1, %s22
      %p28 = scmp.ge.s32.totalorder %s27, 1
      %s29 = scalar_select %p28, 0, %s27
      %s30 = sadd.s32 1, %s21
      %s31 = scalar_select %p28, %s30, %s21
      %p32 = scmp.ge.s32.totalorder %s31, 2
      %s33 = scalar_select %p32, 0, %s31
      %s34 = ssub.s32 %s21, %s33
      %s35 = ssub.s32 %s22, %s29
      %s36 = sor.u32 %s34, %s35
      %p37 = scmp.eq.s32.totalorder %s36, 0
      %s39 = sadd.s32 %s38, 1
      %s40 = scalar_select %p37, %s38, %s39
      %p43 = pneg %p37
      %p44 = scmp.eq.s32.totalorder %s14, 1
      %p45 = por %p43, %p44
      %p46 = scmp.ne.s32.totalorder %s38, %s41
      %p47 = scmp.eq.s32.totalorder %s14, 0
      %p48 = por %p46, %p47
      %p49 = scmp.ne.s32.totalorder %s38, %s41
      %p50 = scmp.eq.s32.totalorder %s19, 1
      %p51 = por %p49, %p50
      %p52 = scmp.ne.s32.totalorder %s41, %s42
      %p53 = scmp.eq.s32.totalorder %s19, 0
      %p54 = por %p52, %p53
      %p55 = scmp.ne.s32.totalorder %s41, %s42
      %p56 = scmp.eq.s32.totalorder %s20, 1
      %p57 = por %p55, %p56
      %p59 = scmp.ne.s32.totalorder %s42, %s58
      %p60 = scmp.eq.s32.totalorder %s20, 0
      %p61 = por %p59, %p60
      %s63 = sadd.s32 %s62, 1
      %p66 = scmp.eq.s32.totalorder %s14, 1
      %p67 = scmp.ne.s32.totalorder %s62, %s64
      %p68 = scmp.eq.s32.totalorder %s14, 0
      %p69 = por %p67, %p68
      %p70 = scmp.ne.s32.totalorder %s62, %s64
      %p71 = scmp.eq.s32.totalorder %s19, 1
      %p72 = por %p70, %p71
      %p73 = scmp.ne.s32.totalorder %s64, %s65
      %p74 = scmp.eq.s32.totalorder %s19, 0
      %p75 = por %p73, %p74
      %p76 = scmp.ne.s32.totalorder %s64, %s65
      %p77 = scmp.eq.s32.totalorder %s20, 1
      %p78 = por %p76, %p77
      %p80 = scmp.ne.s32.totalorder %s65, %s79
      %p81 = scmp.eq.s32.totalorder %s20, 0
      %p82 = por %p80, %p81
      %s84 = sadd.s32 %s83, 1
      %p87 = scmp.eq.s32.totalorder %s14, 1
      %p88 = scmp.ne.s32.totalorder %s83, %s85
      %p89 = scmp.eq.s32.totalorder %s14, 0
      %p90 = por %p88, %p89
      %p91 = scmp.ne.s32.totalorder %s83, %s85
      %p92 = scmp.eq.s32.totalorder %s19, 1
      %p93 = por %p91, %p92
      %p94 = scmp.ne.s32.totalorder %s85, %s86
      %p95 = scmp.eq.s32.totalorder %s19, 0
      %p96 = por %p94, %p95
      %p97 = scmp.ne.s32.totalorder %s85, %s86
      %p98 = scmp.eq.s32.totalorder %s20, 1
      %p99 = por %p97, %p98
      %p101 = scmp.ne.s32.totalorder %s86, %s100
      %p102 = scmp.eq.s32.totalorder %s20, 0
      %p103 = por %p101, %p102
      %s105 = sadd.s32 %s104, 1
      %p108 = scmp.eq.s32.totalorder %s14, 1
      %p109 = scmp.ne.s32.totalorder %s104, %s106
      %p110 = scmp.eq.s32.totalorder %s14, 0
      %p111 = por %p109, %p110
      %p112 = scmp.ne.s32.totalorder %s104, %s106
      %p113 = scmp.eq.s32.totalorder %s19, 1
      %p114 = por %p112, %p113
      %p115 = scmp.ne.s32.totalorder %s106, %s107
      %p116 = scmp.eq.s32.totalorder %s19, 0
      %p117 = por %p115, %p116
      %p118 = scmp.ne.s32.totalorder %s106, %s107
      %p119 = scmp.eq.s32.totalorder %s20, 1
      %p120 = por %p118, %p119
      %p122 = scmp.ne.s32.totalorder %s107, %s121
      %p123 = scmp.eq.s32.totalorder %s20, 0
      %p124 = por %p122, %p123
      %s125 = ssub.s32 %s21, %s33
      %p126 = scmp.eq.s32.totalorder %s125, 0
      %s128 = sadd.s32 %s127, 1
      %s129 = scalar_select %p126, %s127, %s128
      %p132 = pneg %p126
      %p133 = scmp.eq.s32.totalorder %s14, 1
      %p134 = por %p132, %p133
      %p135 = scmp.ne.s32.totalorder %s127, %s130
      %p136 = scmp.eq.s32.totalorder %s14, 0
      %p137 = por %p135, %p136
      %p138 = scmp.ne.s32.totalorder %s127, %s130
      %p139 = scmp.eq.s32.totalorder %s19, 1
      %p140 = por %p138, %p139
      %p141 = scmp.ne.s32.totalorder %s130, %s131
      %p142 = scmp.eq.s32.totalorder %s19, 0
      %p143 = por %p141, %p142
      %p144 = scmp.ne.s32.totalorder %s130, %s131
      %p145 = scmp.eq.s32.totalorder %s20, 1
      %p146 = por %p144, %p145
      %p148 = scmp.ne.s32.totalorder %s131, %s147
      %p149 = scmp.eq.s32.totalorder %s20, 0
      %p150 = por %p148, %p149
      %p151 = scmp.le.s32.totalorder 1, %s14
      %p152 = scmp.lt.s32.totalorder %s14, 3
      %p153 = pnand %p151, %p152
      %p154 = pneg %p153
      // Predicated region
      $region9: #{tpu_custom_call.1} parent=5 // pred_check
        _
      $region10: #{tpu_custom_call.1} parent=5 // pred_check_branch
        %156 = sbr.rel (%p153) target = $region12
      $region11: #{tpu_custom_call.1} parent=5 // pred_region
        %s157 = ssub.s32 %s14, 1
        // Predicated region
        $region13: #{tpu_custom_call.1} parent=11 // pred_check
          %p158 = pneg %p75
        $region14: #{tpu_custom_call.1} parent=11 // pred_check_branch
          %160 = sbr.rel (%p158) target = $region16
        $region15: #{tpu_custom_call.1} parent=11 // pred_region
          _
        $region16: #{tpu_custom_call.1} parent=11 // pred_fallthru
          _
        // Predicated region
        $region17: #{tpu_custom_call.1} parent=11 // pred_check
          %p161 = pneg %p96
        $region18: #{tpu_custom_call.1} parent=11 // pred_check_branch
          %163 = sbr.rel (%p161) target = $region20
        $region19: #{tpu_custom_call.1} parent=11 // pred_region
          %s165 = ssub.s32 384, 384
          %166 = vsyncadd [#allocation6], %s165
          %s167 = sshll.u32 [#allocation5], 4
          %s168 = int_to_ptr.vmem [resolvable:$true] %s167
          %173 = dma.hbm_to_vmem [thread:$0]  %s2, 384, %s168, [#allocation6], 128, 128, 8
        $region20: #{tpu_custom_call.1} parent=11 // pred_fallthru
          _
        // Predicated region
        $region21: #{tpu_custom_call.1} parent=11 // pred_check
          %p174 = pneg %p117
        $region22: #{tpu_custom_call.1} parent=11 // pred_check_branch
          %176 = sbr.rel (%p174) target = $region24
        $region23: #{tpu_custom_call.1} parent=11 // pred_region
          _
        $region24: #{tpu_custom_call.1} parent=11 // pred_fallthru
          _
      $region12: #{tpu_custom_call.1} parent=5 // pred_fallthru
        _
      %p177 = scmp.lt.s32.totalorder %s14, 2
      // Predicated region
      $region25: #{tpu_custom_call.1} parent=5 // pred_check
        %p178 = pneg %p177
      $region26: #{tpu_custom_call.1} parent=5 // pred_check_branch
        %180 = sbr.rel (%p178) target = $region28
      $region27: #{tpu_custom_call.1} parent=5 // pred_region
        // Predicated region
        $region29: #{tpu_custom_call.1} parent=27 // pred_check
          %p181 = pneg %p48
        $region30: #{tpu_custom_call.1} parent=27 // pred_check_branch
          %183 = sbr.rel (%p181) target = $region32
        $region31: #{tpu_custom_call.1} parent=27 // pred_region
          %s184 = sand.u32 %s38, 1
          %s185 = scalar_lea.sflag [#allocation4], %s184
          %s186 = sand.u32 %s38, 1
          %s187 = smul.addr %s186, 64
          %s188 = scalar_lea.vmem [#allocation3], %s187
          %s189 = smul.u32 16, %s22
          %s191 = ssub.s32 1024, 1024
          %192 = vsyncadd %s185, %s191
          %s193 = smul.addr %s21, 16
          %s194 = sadd.s32 %s189, %s193
          %s195 = smul.addr %s194, 64
          %s196 = scalar_lea.hbm %s0, %s195
          %s198 = sshll.u32 %s188, 4
          %s199 = int_to_ptr.vmem [resolvable:$true] %s198
          %201 = dma.hbm_to_vmem [thread:$0]  %s196, 1024, %s199, %s185
        $region32: #{tpu_custom_call.1} parent=27 // pred_fallthru
          _
      $region28: #{tpu_custom_call.1} parent=5 // pred_fallthru
        _
      %p202 = scmp.le.s32.totalorder 1, %s14
      %p203 = scmp.lt.s32.totalorder %s14, 3
      %p204 = pnand %p202, %p203
      %p205 = pneg %p204
      // Predicated region
      $region33: #{tpu_custom_call.1} parent=5 // pred_check
        _
      $region34: #{tpu_custom_call.1} parent=5 // pred_check_branch
        %207 = sbr.rel (%p204) target = $region36
      $region35: #{tpu_custom_call.1} parent=5 // pred_region
        %s208 = ssub.s32 %s14, 1
        %s209 = sand.u32 %s41, 1
        %s210 = scalar_lea.sflag [#allocation4], %s209
        %s211 = sand.u32 %s41, 1
        %s212 = smul.addr %s211, 64
        %s213 = scalar_lea.vmem [#allocation3], %s212
        // Predicated region
        $region37: #{tpu_custom_call.1} parent=35 // pred_check
          %p214 = pneg %p54
        $region38: #{tpu_custom_call.1} parent=35 // pred_check_branch
          %216 = sbr.rel (%p214) target = $region40
        $region39: #{tpu_custom_call.1} parent=35 // pred_region
          %217 = dma.done %s210, 1024
        $region40: #{tpu_custom_call.1} parent=35 // pred_fallthru
          _
        // Predicated region
        $region41: #{tpu_custom_call.1} parent=35 // pred_check
          %p218 = pneg %p96
        $region42: #{tpu_custom_call.1} parent=35 // pred_check_branch
          %220 = sbr.rel (%p218) target = $region44
        $region43: #{tpu_custom_call.1} parent=35 // pred_region
          %221 = dma.done [#allocation6], 384
        $region44: #{tpu_custom_call.1} parent=35 // pred_fallthru
          _
        %s222 = sand.u32 %s41, 1
        %s223 = scalar_lea.sflag [#allocation4], %s222
        %s224 = sand.u32 %s41, 1
        %s225 = smul.addr %s224, 64
        %s226 = scalar_lea.vmem [#allocation3], %s225
        %p227 = pneg %p54
        %p228 = pneg %p51
        %p229 = pneg %p75
        %p230 = pneg %p72
        %p231 = pneg %p96
        %p232 = pneg %p93
        %p233 = pneg %p117
        %p234 = pneg %p114
        %p235 = pneg %p143
        %p236 = pneg %p140
        %p237 = scmp.lt.s32.totalorder %s23, 1
        %s238 = scalar_select %p237, %s23, 1
        %s239 = scalar_lea.vmem %s4, %s238
        %s240 = smul.u32 16, %s24
        %p241 = scmp.lt.s32.totalorder %s23, 1
        %s242 = scalar_select %p241, %s23, 1
        %s243 = scalar_lea.vmem %s4, %s242
        %p244 = scmp.eq.s32.totalorder %s24, 0
        // Predicated region
        $region45: #{tpu_custom_call.1} parent=35 // pred_check
          %p245 = pneg %p244
        $region46: #{tpu_custom_call.1} parent=35 // pred_check_branch
          %247 = sbr.rel (%p245) target = $region48
        $region47: #{tpu_custom_call.1} parent=35 // pred_region
          %248 = vst [vmem:[#allocation2] sm:$0xff] 0.0
        $region48: #{tpu_custom_call.1} parent=35 // pred_fallthru
          _
        %v249 = vld [vmem:[%s213] sm:$0xff]
        %v250 = vld [vmem:[%s213 + $0x8] sm:$0xff]
        %v251 = vld [vmem:[%s213 + $0x10] sm:$0xff]
        %v252 = vld [vmem:[%s213 + $0x18] sm:$0xff]
        %v253 = vld [vmem:[%s213 + $0x20] sm:$0xff]
        %v254 = vld [vmem:[%s213 + $0x28] sm:$0xff]
        %v255 = vld [vmem:[%s213 + $0x30] sm:$0xff]
        %v256 = vld [vmem:[%s213 + $0x38] sm:$0xff]
        %v257 = vunpack.c.l.bf16 %v249
        %v258 = vunpack.c.h.bf16 %v249
        %v259 = vunpack.c.l.bf16 %v250
        %v260 = vunpack.c.h.bf16 %v250
        %v261 = vunpack.c.l.bf16 %v251
        %v262 = vunpack.c.h.bf16 %v251
        %v263 = vunpack.c.l.bf16 %v252
        %v264 = vunpack.c.h.bf16 %v252
        %v265 = vunpack.c.l.bf16 %v253
        %v266 = vunpack.c.h.bf16 %v253
        %v267 = vunpack.c.l.bf16 %v254
        %v268 = vunpack.c.h.bf16 %v254
        %v269 = vunpack.c.l.bf16 %v255
        %v270 = vunpack.c.h.bf16 %v255
        %v271 = vunpack.c.l.bf16 %v256
        %v272 = vunpack.c.h.bf16 %v256
        %v273 = vld [vmem:[%s1] sm:$0xff]
        %275 = vset.pattern.permute.xlu0 0
        %276 = vperm.xlu0 %275, %v273
        %v277 = vpop.permute.xlu0 %276
        %v279 = vlaneseq
        %v280 = vshrl.u32 %v279, 7
        %v281 = vsub.s32 0, %v280
        %v282 = vrot.slane %v257, %v281
        %v283 = vlaneseq
        %v284 = vshrl.u32 %v283, 7
        %v285 = vsub.s32 0, %v284
        %v286 = vrot.slane %v258, %v285
        %v287 = vlaneseq
        %v288 = vshrl.u32 %v287, 7
        %v289 = vsub.s32 0, %v288
        %v290 = vrot.slane %v259, %v289
        %v291 = vlaneseq
        %v292 = vshrl.u32 %v291, 7
        %v293 = vsub.s32 0, %v292
        %v294 = vrot.slane %v260, %v293
        %v295 = vlaneseq
        %v296 = vshrl.u32 %v295, 7
        %v297 = vsub.s32 0, %v296
        %v298 = vrot.slane %v261, %v297
        %v299 = vlaneseq
        %v300 = vshrl.u32 %v299, 7
        %v301 = vsub.s32 0, %v300
        %v302 = vrot.slane %v262, %v301
        %v303 = vlaneseq
        %v304 = vshrl.u32 %v303, 7
        %v305 = vsub.s32 0, %v304
        %v306 = vrot.slane %v263, %v305
        %v307 = vlaneseq
        %v308 = vshrl.u32 %v307, 7
        %v309 = vsub.s32 0, %v308
        %v310 = vrot.slane %v264, %v309
        %v311 = vlaneseq
        %v312 = vshrl.u32 %v311, 7
        %v313 = vsub.s32 0, %v312
        %v314 = vrot.slane %v265, %v313
        %v315 = vlaneseq
        %v316 = vshrl.u32 %v315, 7
        %v317 = vsub.s32 0, %v316
        %v318 = vrot.slane %v266, %v317
        %v319 = vlaneseq
        %v320 = vshrl.u32 %v319, 7
        %v321 = vsub.s32 0, %v320
        %v322 = vrot.slane %v267, %v321
        %v323 = vlaneseq
        %v324 = vshrl.u32 %v323, 7
        %v325 = vsub.s32 0, %v324
        %v326 = vrot.slane %v268, %v325
        %v327 = vlaneseq
        %v328 = vshrl.u32 %v327, 7
        %v329 = vsub.s32 0, %v328
        %v330 = vrot.slane %v269, %v329
        %v331 = vlaneseq
        %v332 = vshrl.u32 %v331, 7
        %v333 = vsub.s32 0, %v332
        %v334 = vrot.slane %v270, %v333
        %v335 = vlaneseq
        %v336 = vshrl.u32 %v335, 7
        %v337 = vsub.s32 0, %v336
        %v338 = vrot.slane %v271, %v337
        %v339 = vlaneseq
        %v340 = vshrl.u32 %v339, 7
        %v341 = vsub.s32 0, %v340
        %v342 = vrot.slane %v272, %v341
        %v343 = vmul.f32 %v277, %v282
        %v344 = vmul.f32 %v277, %v286
        %v345 = vmul.f32 %v277, %v290
        %v346 = vmul.f32 %v277, %v294
        %v347 = vmul.f32 %v277, %v298
        %v348 = vmul.f32 %v277, %v302
        %v349 = vmul.f32 %v277, %v306
        %v350 = vmul.f32 %v277, %v310
        %v351 = vmul.f32 %v277, %v314
        %v352 = vmul.f32 %v277, %v318
        %v353 = vmul.f32 %v277, %v322
        %v354 = vmul.f32 %v277, %v326
        %v355 = vmul.f32 %v277, %v330
        %v356 = vmul.f32 %v277, %v334
        %v357 = vmul.f32 %v277, %v338
        %v358 = vmul.f32 %v277, %v342
        %359 = vset.pattern.permute.xlu0 1
        %360 = vperm.xlu0 %359, %v273
        %v361 = vpop.permute.xlu0 %360
        %v363 = vlaneseq
        %v364 = vshrl.u32 %v363, 7
        %v365 = vsub.s32 1, %v364
        %v366 = vrot.slane %v257, %v365
        %v367 = vlaneseq
        %v368 = vshrl.u32 %v367, 7
        %v369 = vsub.s32 1, %v368
        %v370 = vrot.slane %v258, %v369
        %v371 = vlaneseq
        %v372 = vshrl.u32 %v371, 7
        %v373 = vsub.s32 1, %v372
        %v374 = vrot.slane %v259, %v373
        %v375 = vlaneseq
        %v376 = vshrl.u32 %v375, 7
        %v377 = vsub.s32 1, %v376
        %v378 = vrot.slane %v260, %v377
        %v379 = vlaneseq
        %v380 = vshrl.u32 %v379, 7
        %v381 = vsub.s32 1, %v380
        %v382 = vrot.slane %v261, %v381
        %v383 = vlaneseq
        %v384 = vshrl.u32 %v383, 7
        %v385 = vsub.s32 1, %v384
        %v386 = vrot.slane %v262, %v385
        %v387 = vlaneseq
        %v388 = vshrl.u32 %v387, 7
        %v389 = vsub.s32 1, %v388
        %v390 = vrot.slane %v263, %v389
        %v391 = vlaneseq
        %v392 = vshrl.u32 %v391, 7
        %v393 = vsub.s32 1, %v392
        %v394 = vrot.slane %v264, %v393
        %v395 = vlaneseq
        %v396 = vshrl.u32 %v395, 7
        %v397 = vsub.s32 1, %v396
        %v398 = vrot.slane %v265, %v397
        %v399 = vlaneseq
        %v400 = vshrl.u32 %v399, 7
        %v401 = vsub.s32 1, %v400
        %v402 = vrot.slane %v266, %v401
        %v403 = vlaneseq
        %v404 = vshrl.u32 %v403, 7
        %v405 = vsub.s32 1, %v404
        %v406 = vrot.slane %v267, %v405
        %v407 = vlaneseq
        %v408 = vshrl.u32 %v407, 7
        %v409 = vsub.s32 1, %v408
        %v410 = vrot.slane %v268, %v409
        %v411 = vlaneseq
        %v412 = vshrl.u32 %v411, 7
        %v413 = vsub.s32 1, %v412
        %v414 = vrot.slane %v269, %v413
        %v415 = vlaneseq
        %v416 = vshrl.u32 %v415, 7
        %v417 = vsub.s32 1, %v416
        %v418 = vrot.slane %v270, %v417
        %v419 = vlaneseq
        %v420 = vshrl.u32 %v419, 7
        %v421 = vsub.s32 1, %v420
        %v422 = vrot.slane %v271, %v421
        %v423 = vlaneseq
        %v424 = vshrl.u32 %v423, 7
        %v425 = vsub.s32 1, %v424
        %v426 = vrot.slane %v272, %v425
        %v427 = vmul.f32 %v361, %v366
        %v428 = vmul.f32 %v361, %v370
        %v429 = vmul.f32 %v361, %v374
        %v430 = vmul.f32 %v361, %v378
        %v431 = vmul.f32 %v361, %v382
        %v432 = vmul.f32 %v361, %v386
        %v433 = vmul.f32 %v361, %v390
        %v434 = vmul.f32 %v361, %v394
        %v435 = vmul.f32 %v361, %v398
        %v436 = vmul.f32 %v361, %v402
        %v437 = vmul.f32 %v361, %v406
        %v438 = vmul.f32 %v361, %v410
        %v439 = vmul.f32 %v361, %v414
        %v440 = vmul.f32 %v361, %v418
        %v441 = vmul.f32 %v361, %v422
        %v442 = vmul.f32 %v361, %v426
        %v443 = vadd.f32 %v343, %v427
        %v444 = vadd.f32 %v344, %v428
        %v445 = vadd.f32 %v345, %v429
        %v446 = vadd.f32 %v346, %v430
        %v447 = vadd.f32 %v347, %v431
        %v448 = vadd.f32 %v348, %v432
        %v449 = vadd.f32 %v349, %v433
        %v450 = vadd.f32 %v350, %v434
        %v451 = vadd.f32 %v351, %v435
        %v452 = vadd.f32 %v352, %v436
        %v453 = vadd.f32 %v353, %v437
        %v454 = vadd.f32 %v354, %v438
        %v455 = vadd.f32 %v355, %v439
        %v456 = vadd.f32 %v356, %v440
        %v457 = vadd.f32 %v357, %v441
        %v458 = vadd.f32 %v358, %v442
        %459 = vset.pattern.permute.xlu0 2
        %460 = vperm.xlu0 %459, %v273
        %v461 = vpop.permute.xlu0 %460
        %v463 = vlaneseq
        %v464 = vshrl.u32 %v463, 7
        %v465 = vsub.s32 2, %v464
        %v466 = vrot.slane %v257, %v465
        %v467 = vlaneseq
        %v468 = vshrl.u32 %v467, 7
        %v469 = vsub.s32 2, %v468
        %v470 = vrot.slane %v258, %v469
        %v471 = vlaneseq
        %v472 = vshrl.u32 %v471, 7
        %v473 = vsub.s32 2, %v472
        %v474 = vrot.slane %v259, %v473
        %v475 = vlaneseq
        %v476 = vshrl.u32 %v475, 7
        %v477 = vsub.s32 2, %v476
        %v478 = vrot.slane %v260, %v477
        %v479 = vlaneseq
        %v480 = vshrl.u32 %v479, 7
        %v481 = vsub.s32 2, %v480
        %v482 = vrot.slane %v261, %v481
        %v483 = vlaneseq
        %v484 = vshrl.u32 %v483, 7
        %v485 = vsub.s32 2, %v484
        %v486 = vrot.slane %v262, %v485
        %v487 = vlaneseq
        %v488 = vshrl.u32 %v487, 7
        %v489 = vsub.s32 2, %v488
        %v490 = vrot.slane %v263, %v489
        %v491 = vlaneseq
        %v492 = vshrl.u32 %v491, 7
        %v493 = vsub.s32 2, %v492
        %v494 = vrot.slane %v264, %v493
        %v495 = vlaneseq
        %v496 = vshrl.u32 %v495, 7
        %v497 = vsub.s32 2, %v496
        %v498 = vrot.slane %v265, %v497
        %v499 = vlaneseq
        %v500 = vshrl.u32 %v499, 7
        %v501 = vsub.s32 2, %v500
        %v502 = vrot.slane %v266, %v501
        %v503 = vlaneseq
        %v504 = vshrl.u32 %v503, 7
        %v505 = vsub.s32 2, %v504
        %v506 = vrot.slane %v267, %v505
        %v507 = vlaneseq
        %v508 = vshrl.u32 %v507, 7
        %v509 = vsub.s32 2, %v508
        %v510 = vrot.slane %v268, %v509
        %v511 = vlaneseq
        %v512 = vshrl.u32 %v511, 7
        %v513 = vsub.s32 2, %v512
        %v514 = vrot.slane %v269, %v513
        %v515 = vlaneseq
        %v516 = vshrl.u32 %v515, 7
        %v517 = vsub.s32 2, %v516
        %v518 = vrot.slane %v270, %v517
        %v519 = vlaneseq
        %v520 = vshrl.u32 %v519, 7
        %v521 = vsub.s32 2, %v520
        %v522 = vrot.slane %v271, %v521
        %v523 = vlaneseq
        %v524 = vshrl.u32 %v523, 7
        %v525 = vsub.s32 2, %v524
        %v526 = vrot.slane %v272, %v525
        %v527 = vmul.f32 %v461, %v466
        %v528 = vmul.f32 %v461, %v470
        %v529 = vmul.f32 %v461, %v474
        %v530 = vmul.f32 %v461, %v478
        %v531 = vmul.f32 %v461, %v482
        %v532 = vmul.f32 %v461, %v486
        %v533 = vmul.f32 %v461, %v490
        %v534 = vmul.f32 %v461, %v494
        %v535 = vmul.f32 %v461, %v498
        %v536 = vmul.f32 %v461, %v502
        %v537 = vmul.f32 %v461, %v506
        %v538 = vmul.f32 %v461, %v510
        %v539 = vmul.f32 %v461, %v514
        %v540 = vmul.f32 %v461, %v518
        %v541 = vmul.f32 %v461, %v522
        %v542 = vmul.f32 %v461, %v526
        %v543 = vadd.f32 %v443, %v527
        %v544 = vadd.f32 %v444, %v528
        %v545 = vadd.f32 %v445, %v529
        %v546 = vadd.f32 %v446, %v530
        %v547 = vadd.f32 %v447, %v531
        %v548 = vadd.f32 %v448, %v532
        %v549 = vadd.f32 %v449, %v533
        %v550 = vadd.f32 %v450, %v534
        %v551 = vadd.f32 %v451, %v535
        %v552 = vadd.f32 %v452, %v536
        %v553 = vadd.f32 %v453, %v537
        %v554 = vadd.f32 %v454, %v538
        %v555 = vadd.f32 %v455, %v539
        %v556 = vadd.f32 %v456, %v540
        %v557 = vadd.f32 %v457, %v541
        %v558 = vadd.f32 %v458, %v542
        %559 = vset.pattern.permute.xlu0 3
        %560 = vperm.xlu0 %559, %v273
        %v561 = vpop.permute.xlu0 %560
        %v563 = vlaneseq
        %v564 = vshrl.u32 %v563, 7
        %v565 = vsub.s32 3, %v564
        %v566 = vrot.slane %v257, %v565
        %v567 = vlaneseq
        %v568 = vshrl.u32 %v567, 7
        %v569 = vsub.s32 3, %v568
        %v570 = vrot.slane %v258, %v569
        %v571 = vlaneseq
        %v572 = vshrl.u32 %v571, 7
        %v573 = vsub.s32 3, %v572
        %v574 = vrot.slane %v259, %v573
        %v575 = vlaneseq
        %v576 = vshrl.u32 %v575, 7
        %v577 = vsub.s32 3, %v576
        %v578 = vrot.slane %v260, %v577
        %v579 = vlaneseq
        %v580 = vshrl.u32 %v579, 7
        %v581 = vsub.s32 3, %v580
        %v582 = vrot.slane %v261, %v581
        %v583 = vlaneseq
        %v584 = vshrl.u32 %v583, 7
        %v585 = vsub.s32 3, %v584
        %v586 = vrot.slane %v262, %v585
        %v587 = vlaneseq
        %v588 = vshrl.u32 %v587, 7
        %v589 = vsub.s32 3, %v588
        %v590 = vrot.slane %v263, %v589
        %v591 = vlaneseq
        %v592 = vshrl.u32 %v591, 7
        %v593 = vsub.s32 3, %v592
        %v594 = vrot.slane %v264, %v593
        %v595 = vlaneseq
        %v596 = vshrl.u32 %v595, 7
        %v597 = vsub.s32 3, %v596
        %v598 = vrot.slane %v265, %v597
        %v599 = vlaneseq
        %v600 = vshrl.u32 %v599, 7
        %v601 = vsub.s32 3, %v600
        %v602 = vrot.slane %v266, %v601
        %v603 = vlaneseq
        %v604 = vshrl.u32 %v603, 7
        %v605 = vsub.s32 3, %v604
        %v606 = vrot.slane %v267, %v605
        %v607 = vlaneseq
        %v608 = vshrl.u32 %v607, 7
        %v609 = vsub.s32 3, %v608
        %v610 = vrot.slane %v268, %v609
        %v611 = vlaneseq
        %v612 = vshrl.u32 %v611, 7
        %v613 = vsub.s32 3, %v612
        %v614 = vrot.slane %v269, %v613
        %v615 = vlaneseq
        %v616 = vshrl.u32 %v615, 7
        %v617 = vsub.s32 3, %v616
        %v618 = vrot.slane %v270, %v617
        %v619 = vlaneseq
        %v620 = vshrl.u32 %v619, 7
        %v621 = vsub.s32 3, %v620
        %v622 = vrot.slane %v271, %v621
        %v623 = vlaneseq
        %v624 = vshrl.u32 %v623, 7
        %v625 = vsub.s32 3, %v624
        %v626 = vrot.slane %v272, %v625
        %v627 = vmul.f32 %v561, %v566
        %v628 = vmul.f32 %v561, %v570
        %v629 = vmul.f32 %v561, %v574
        %v630 = vmul.f32 %v561, %v578
        %v631 = vmul.f32 %v561, %v582
        %v632 = vmul.f32 %v561, %v586
        %v633 = vmul.f32 %v561, %v590
        %v634 = vmul.f32 %v561, %v594
        %v635 = vmul.f32 %v561, %v598
        %v636 = vmul.f32 %v561, %v602
        %v637 = vmul.f32 %v561, %v606
        %v638 = vmul.f32 %v561, %v610
        %v639 = vmul.f32 %v561, %v614
        %v640 = vmul.f32 %v561, %v618
        %v641 = vmul.f32 %v561, %v622
        %v642 = vmul.f32 %v561, %v626
        %v643 = vadd.f32 %v543, %v627
        %v644 = vadd.f32 %v544, %v628
        %v645 = vadd.f32 %v545, %v629
        %v646 = vadd.f32 %v546, %v630
        %v647 = vadd.f32 %v547, %v631
        %v648 = vadd.f32 %v548, %v632
        %v649 = vadd.f32 %v549, %v633
        %v650 = vadd.f32 %v550, %v634
        %v651 = vadd.f32 %v551, %v635
        %v652 = vadd.f32 %v552, %v636
        %v653 = vadd.f32 %v553, %v637
        %v654 = vadd.f32 %v554, %v638
        %v655 = vadd.f32 %v555, %v639
        %v656 = vadd.f32 %v556, %v640
        %v657 = vadd.f32 %v557, %v641
        %v658 = vadd.f32 %v558, %v642
        %659 = vset.pattern.permute.xlu0 4
        %660 = vperm.xlu0 %659, %v273
        %v661 = vpop.permute.xlu0 %660
        %v663 = vlaneseq
        %v664 = vshrl.u32 %v663, 7
        %v665 = vsub.s32 4, %v664
        %v666 = vrot.slane %v257, %v665
        %v667 = vlaneseq
        %v668 = vshrl.u32 %v667, 7
        %v669 = vsub.s32 4, %v668
        %v670 = vrot.slane %v258, %v669
        %v671 = vlaneseq
        %v672 = vshrl.u32 %v671, 7
        %v673 = vsub.s32 4, %v672
        %v674 = vrot.slane %v259, %v673
        %v675 = vlaneseq
        %v676 = vshrl.u32 %v675, 7
        %v677 = vsub.s32 4, %v676
        %v678 = vrot.slane %v260, %v677
        %v679 = vlaneseq
        %v680 = vshrl.u32 %v679, 7
        %v681 = vsub.s32 4, %v680
        %v682 = vrot.slane %v261, %v681
        %v683 = vlaneseq
        %v684 = vshrl.u32 %v683, 7
        %v685 = vsub.s32 4, %v684
        %v686 = vrot.slane %v262, %v685
        %v687 = vlaneseq
        %v688 = vshrl.u32 %v687, 7
        %v689 = vsub.s32 4, %v688
        %v690 = vrot.slane %v263, %v689
        %v691 = vlaneseq
        %v692 = vshrl.u32 %v691, 7
        %v693 = vsub.s32 4, %v692
        %v694 = vrot.slane %v264, %v693
        %v695 = vlaneseq
        %v696 = vshrl.u32 %v695, 7
        %v697 = vsub.s32 4, %v696
        %v698 = vrot.slane %v265, %v697
        %v699 = vlaneseq
        %v700 = vshrl.u32 %v699, 7
        %v701 = vsub.s32 4, %v700
        %v702 = vrot.slane %v266, %v701
        %v703 = vlaneseq
        %v704 = vshrl.u32 %v703, 7
        %v705 = vsub.s32 4, %v704
        %v706 = vrot.slane %v267, %v705
        %v707 = vlaneseq
        %v708 = vshrl.u32 %v707, 7
        %v709 = vsub.s32 4, %v708
        %v710 = vrot.slane %v268, %v709
        %v711 = vlaneseq
        %v712 = vshrl.u32 %v711, 7
        %v713 = vsub.s32 4, %v712
        %v714 = vrot.slane %v269, %v713
        %v715 = vlaneseq
        %v716 = vshrl.u32 %v715, 7
        %v717 = vsub.s32 4, %v716
        %v718 = vrot.slane %v270, %v717
        %v719 = vlaneseq
        %v720 = vshrl.u32 %v719, 7
        %v721 = vsub.s32 4, %v720
        %v722 = vrot.slane %v271, %v721
        %v723 = vlaneseq
        %v724 = vshrl.u32 %v723, 7
        %v725 = vsub.s32 4, %v724
        %v726 = vrot.slane %v272, %v725
        %v727 = vmul.f32 %v661, %v666
        %v728 = vmul.f32 %v661, %v670
        %v729 = vmul.f32 %v661, %v674
        %v730 = vmul.f32 %v661, %v678
        %v731 = vmul.f32 %v661, %v682
        %v732 = vmul.f32 %v661, %v686
        %v733 = vmul.f32 %v661, %v690
        %v734 = vmul.f32 %v661, %v694
        %v735 = vmul.f32 %v661, %v698
        %v736 = vmul.f32 %v661, %v702
        %v737 = vmul.f32 %v661, %v706
        %v738 = vmul.f32 %v661, %v710
        %v739 = vmul.f32 %v661, %v714
        %v740 = vmul.f32 %v661, %v718
        %v741 = vmul.f32 %v661, %v722
        %v742 = vmul.f32 %v661, %v726
        %v743 = vadd.f32 %v643, %v727
        %v744 = vadd.f32 %v644, %v728
        %v745 = vadd.f32 %v645, %v729
        %v746 = vadd.f32 %v646, %v730
        %v747 = vadd.f32 %v647, %v731
        %v748 = vadd.f32 %v648, %v732
        %v749 = vadd.f32 %v649, %v733
        %v750 = vadd.f32 %v650, %v734
        %v751 = vadd.f32 %v651, %v735
        %v752 = vadd.f32 %v652, %v736
        %v753 = vadd.f32 %v653, %v737
        %v754 = vadd.f32 %v654, %v738
        %v755 = vadd.f32 %v655, %v739
        %v756 = vadd.f32 %v656, %v740
        %v757 = vadd.f32 %v657, %v741
        %v758 = vadd.f32 %v658, %v742
        %759 = vset.pattern.permute.xlu0 5
        %760 = vperm.xlu0 %759, %v273
        %v761 = vpop.permute.xlu0 %760
        %v763 = vlaneseq
        %v764 = vshrl.u32 %v763, 7
        %v765 = vsub.s32 5, %v764
        %v766 = vrot.slane %v257, %v765
        %v767 = vlaneseq
        %v768 = vshrl.u32 %v767, 7
        %v769 = vsub.s32 5, %v768
        %v770 = vrot.slane %v258, %v769
        %v771 = vlaneseq
        %v772 = vshrl.u32 %v771, 7
        %v773 = vsub.s32 5, %v772
        %v774 = vrot.slane %v259, %v773
        %v775 = vlaneseq
        %v776 = vshrl.u32 %v775, 7
        %v777 = vsub.s32 5, %v776
        %v778 = vrot.slane %v260, %v777
        %v779 = vlaneseq
        %v780 = vshrl.u32 %v779, 7
        %v781 = vsub.s32 5, %v780
        %v782 = vrot.slane %v261, %v781
        %v783 = vlaneseq
        %v784 = vshrl.u32 %v783, 7
        %v785 = vsub.s32 5, %v784
        %v786 = vrot.slane %v262, %v785
        %v787 = vlaneseq
        %v788 = vshrl.u32 %v787, 7
        %v789 = vsub.s32 5, %v788
        %v790 = vrot.slane %v263, %v789
        %v791 = vlaneseq
        %v792 = vshrl.u32 %v791, 7
        %v793 = vsub.s32 5, %v792
        %v794 = vrot.slane %v264, %v793
        %v795 = vlaneseq
        %v796 = vshrl.u32 %v795, 7
        %v797 = vsub.s32 5, %v796
        %v798 = vrot.slane %v265, %v797
        %v799 = vlaneseq
        %v800 = vshrl.u32 %v799, 7
        %v801 = vsub.s32 5, %v800
        %v802 = vrot.slane %v266, %v801
        %v803 = vlaneseq
        %v804 = vshrl.u32 %v803, 7
        %v805 = vsub.s32 5, %v804
        %v806 = vrot.slane %v267, %v805
        %v807 = vlaneseq
        %v808 = vshrl.u32 %v807, 7
        %v809 = vsub.s32 5, %v808
        %v810 = vrot.slane %v268, %v809
        %v811 = vlaneseq
        %v812 = vshrl.u32 %v811, 7
        %v813 = vsub.s32 5, %v812
        %v814 = vrot.slane %v269, %v813
        %v815 = vlaneseq
        %v816 = vshrl.u32 %v815, 7
        %v817 = vsub.s32 5, %v816
        %v818 = vrot.slane %v270, %v817
        %v819 = vlaneseq
        %v820 = vshrl.u32 %v819, 7
        %v821 = vsub.s32 5, %v820
        %v822 = vrot.slane %v271, %v821
        %v823 = vlaneseq
        %v824 = vshrl.u32 %v823, 7
        %v825 = vsub.s32 5, %v824
        %v826 = vrot.slane %v272, %v825
        %v827 = vmul.f32 %v761, %v766
        %v828 = vmul.f32 %v761, %v770
        %v829 = vmul.f32 %v761, %v774
        %v830 = vmul.f32 %v761, %v778
        %v831 = vmul.f32 %v761, %v782
        %v832 = vmul.f32 %v761, %v786
        %v833 = vmul.f32 %v761, %v790
        %v834 = vmul.f32 %v761, %v794
        %v835 = vmul.f32 %v761, %v798
        %v836 = vmul.f32 %v761, %v802
        %v837 = vmul.f32 %v761, %v806
        %v838 = vmul.f32 %v761, %v810
        %v839 = vmul.f32 %v761, %v814
        %v840 = vmul.f32 %v761, %v818
        %v841 = vmul.f32 %v761, %v822
        %v842 = vmul.f32 %v761, %v826
        %v843 = vadd.f32 %v743, %v827
        %v844 = vadd.f32 %v744, %v828
        %v845 = vadd.f32 %v745, %v829
        %v846 = vadd.f32 %v746, %v830
        %v847 = vadd.f32 %v747, %v831
        %v848 = vadd.f32 %v748, %v832
        %v849 = vadd.f32 %v749, %v833
        %v850 = vadd.f32 %v750, %v834
        %v851 = vadd.f32 %v751, %v835
        %v852 = vadd.f32 %v752, %v836
        %v853 = vadd.f32 %v753, %v837
        %v854 = vadd.f32 %v754, %v838
        %v855 = vadd.f32 %v755, %v839
        %v856 = vadd.f32 %v756, %v840
        %v857 = vadd.f32 %v757, %v841
        %v858 = vadd.f32 %v758, %v842
        %859 = vset.pattern.permute.xlu0 6
        %860 = vperm.xlu0 %859, %v273
        %v861 = vpop.permute.xlu0 %860
        %v863 = vlaneseq
        %v864 = vshrl.u32 %v863, 7
        %v865 = vsub.s32 6, %v864
        %v866 = vrot.slane %v257, %v865
        %v867 = vlaneseq
        %v868 = vshrl.u32 %v867, 7
        %v869 = vsub.s32 6, %v868
        %v870 = vrot.slane %v258, %v869
        %v871 = vlaneseq
        %v872 = vshrl.u32 %v871, 7
        %v873 = vsub.s32 6, %v872
        %v874 = vrot.slane %v259, %v873
        %v875 = vlaneseq
        %v876 = vshrl.u32 %v875, 7
        %v877 = vsub.s32 6, %v876
        %v878 = vrot.slane %v260, %v877
        %v879 = vlaneseq
        %v880 = vshrl.u32 %v879, 7
        %v881 = vsub.s32 6, %v880
        %v882 = vrot.slane %v261, %v881
        %v883 = vlaneseq
        %v884 = vshrl.u32 %v883, 7
        %v885 = vsub.s32 6, %v884
        %v886 = vrot.slane %v262, %v885
        %v887 = vlaneseq
        %v888 = vshrl.u32 %v887, 7
        %v889 = vsub.s32 6, %v888
        %v890 = vrot.slane %v263, %v889
        %v891 = vlaneseq
        %v892 = vshrl.u32 %v891, 7
        %v893 = vsub.s32 6, %v892
        %v894 = vrot.slane %v264, %v893
        %v895 = vlaneseq
        %v896 = vshrl.u32 %v895, 7
        %v897 = vsub.s32 6, %v896
        %v898 = vrot.slane %v265, %v897
        %v899 = vlaneseq
        %v900 = vshrl.u32 %v899, 7
        %v901 = vsub.s32 6, %v900
        %v902 = vrot.slane %v266, %v901
        %v903 = vlaneseq
        %v904 = vshrl.u32 %v903, 7
        %v905 = vsub.s32 6, %v904
        %v906 = vrot.slane %v267, %v905
        %v907 = vlaneseq
        %v908 = vshrl.u32 %v907, 7
        %v909 = vsub.s32 6, %v908
        %v910 = vrot.slane %v268, %v909
        %v911 = vlaneseq
        %v912 = vshrl.u32 %v911, 7
        %v913 = vsub.s32 6, %v912
        %v914 = vrot.slane %v269, %v913
        %v915 = vlaneseq
        %v916 = vshrl.u32 %v915, 7
        %v917 = vsub.s32 6, %v916
        %v918 = vrot.slane %v270, %v917
        %v919 = vlaneseq
        %v920 = vshrl.u32 %v919, 7
        %v921 = vsub.s32 6, %v920
        %v922 = vrot.slane %v271, %v921
        %v923 = vlaneseq
        %v924 = vshrl.u32 %v923, 7
        %v925 = vsub.s32 6, %v924
        %v926 = vrot.slane %v272, %v925
        %v927 = vmul.f32 %v861, %v866
        %v928 = vmul.f32 %v861, %v870
        %v929 = vmul.f32 %v861, %v874
        %v930 = vmul.f32 %v861, %v878
        %v931 = vmul.f32 %v861, %v882
        %v932 = vmul.f32 %v861, %v886
        %v933 = vmul.f32 %v861, %v890
        %v934 = vmul.f32 %v861, %v894
        %v935 = vmul.f32 %v861, %v898
        %v936 = vmul.f32 %v861, %v902
        %v937 = vmul.f32 %v861, %v906
        %v938 = vmul.f32 %v861, %v910
        %v939 = vmul.f32 %v861, %v914
        %v940 = vmul.f32 %v861, %v918
        %v941 = vmul.f32 %v861, %v922
        %v942 = vmul.f32 %v861, %v926
        %v943 = vadd.f32 %v843, %v927
        %v944 = vadd.f32 %v844, %v928
        %v945 = vadd.f32 %v845, %v929
        %v946 = vadd.f32 %v846, %v930
        %v947 = vadd.f32 %v847, %v931
        %v948 = vadd.f32 %v848, %v932
        %v949 = vadd.f32 %v849, %v933
        %v950 = vadd.f32 %v850, %v934
        %v951 = vadd.f32 %v851, %v935
        %v952 = vadd.f32 %v852, %v936
        %v953 = vadd.f32 %v853, %v937
        %v954 = vadd.f32 %v854, %v938
        %v955 = vadd.f32 %v855, %v939
        %v956 = vadd.f32 %v856, %v940
        %v957 = vadd.f32 %v857, %v941
        %v958 = vadd.f32 %v858, %v942
        %959 = vset.pattern.permute.xlu0 7
        %960 = vperm.xlu0 %959, %v273
        %v961 = vpop.permute.xlu0 %960
        %v963 = vlaneseq
        %v964 = vshrl.u32 %v963, 7
        %v965 = vsub.s32 7, %v964
        %v966 = vrot.slane %v257, %v965
        %v967 = vlaneseq
        %v968 = vshrl.u32 %v967, 7
        %v969 = vsub.s32 7, %v968
        %v970 = vrot.slane %v258, %v969
        %v971 = vlaneseq
        %v972 = vshrl.u32 %v971, 7
        %v973 = vsub.s32 7, %v972
        %v974 = vrot.slane %v259, %v973
        %v975 = vlaneseq
        %v976 = vshrl.u32 %v975, 7
        %v977 = vsub.s32 7, %v976
        %v978 = vrot.slane %v260, %v977
        %v979 = vlaneseq
        %v980 = vshrl.u32 %v979, 7
        %v981 = vsub.s32 7, %v980
        %v982 = vrot.slane %v261, %v981
        %v983 = vlaneseq
        %v984 = vshrl.u32 %v983, 7
        %v985 = vsub.s32 7, %v984
        %v986 = vrot.slane %v262, %v985
        %v987 = vlaneseq
        %v988 = vshrl.u32 %v987, 7
        %v989 = vsub.s32 7, %v988
        %v990 = vrot.slane %v263, %v989
        %v991 = vlaneseq
        %v992 = vshrl.u32 %v991, 7
        %v993 = vsub.s32 7, %v992
        %v994 = vrot.slane %v264, %v993
        %v995 = vlaneseq
        %v996 = vshrl.u32 %v995, 7
        %v997 = vsub.s32 7, %v996
        %v998 = vrot.slane %v265, %v997
        %v999 = vlaneseq
        %v1000 = vshrl.u32 %v999, 7
        %v1001 = vsub.s32 7, %v1000
        %v1002 = vrot.slane %v266, %v1001
        %v1003 = vlaneseq
        %v1004 = vshrl.u32 %v1003, 7
        %v1005 = vsub.s32 7, %v1004
        %v1006 = vrot.slane %v267, %v1005
        %v1007 = vlaneseq
        %v1008 = vshrl.u32 %v1007, 7
        %v1009 = vsub.s32 7, %v1008
        %v1010 = vrot.slane %v268, %v1009
        %v1011 = vlaneseq
        %v1012 = vshrl.u32 %v1011, 7
        %v1013 = vsub.s32 7, %v1012
        %v1014 = vrot.slane %v269, %v1013
        %v1015 = vlaneseq
        %v1016 = vshrl.u32 %v1015, 7
        %v1017 = vsub.s32 7, %v1016
        %v1018 = vrot.slane %v270, %v1017
        %v1019 = vlaneseq
        %v1020 = vshrl.u32 %v1019, 7
        %v1021 = vsub.s32 7, %v1020
        %v1022 = vrot.slane %v271, %v1021
        %v1023 = vlaneseq
        %v1024 = vshrl.u32 %v1023, 7
        %v1025 = vsub.s32 7, %v1024
        %v1026 = vrot.slane %v272, %v1025
        %v1027 = vmul.f32 %v961, %v966
        %v1028 = vmul.f32 %v961, %v970
        %v1029 = vmul.f32 %v961, %v974
        %v1030 = vmul.f32 %v961, %v978
        %v1031 = vmul.f32 %v961, %v982
        %v1032 = vmul.f32 %v961, %v986
        %v1033 = vmul.f32 %v961, %v990
        %v1034 = vmul.f32 %v961, %v994
        %v1035 = vmul.f32 %v961, %v998
        %v1036 = vmul.f32 %v961, %v1002
        %v1037 = vmul.f32 %v961, %v1006
        %v1038 = vmul.f32 %v961, %v1010
        %v1039 = vmul.f32 %v961, %v1014
        %v1040 = vmul.f32 %v961, %v1018
        %v1041 = vmul.f32 %v961, %v1022
        %v1042 = vmul.f32 %v961, %v1026
        %v1043 = vadd.f32 %v943, %v1027
        %v1044 = vadd.f32 %v944, %v1028
        %v1045 = vadd.f32 %v945, %v1029
        %v1046 = vadd.f32 %v946, %v1030
        %v1047 = vadd.f32 %v947, %v1031
        %v1048 = vadd.f32 %v948, %v1032
        %v1049 = vadd.f32 %v949, %v1033
        %v1050 = vadd.f32 %v950, %v1034
        %v1051 = vadd.f32 %v951, %v1035
        %v1052 = vadd.f32 %v952, %v1036
        %v1053 = vadd.f32 %v953, %v1037
        %v1054 = vadd.f32 %v954, %v1038
        %v1055 = vadd.f32 %v955, %v1039
        %v1056 = vadd.f32 %v956, %v1040
        %v1057 = vadd.f32 %v957, %v1041
        %v1058 = vadd.f32 %v958, %v1042
        %v1059 = vld [vmem:[%s3] sm:$0xff]
        %1061 = vset.pattern.permute.xlu0 0
        %1062 = vperm.xlu0 %1061, %v1059
        %v1063 = vpop.permute.xlu0 %1062
        %v1065 = vadd.f32 %v1043, %v1063
        %v1066 = vadd.f32 %v1044, %v1063
        %v1067 = vadd.f32 %v1045, %v1063
        %v1068 = vadd.f32 %v1046, %v1063
        %v1069 = vadd.f32 %v1047, %v1063
        %v1070 = vadd.f32 %v1048, %v1063
        %v1071 = vadd.f32 %v1049, %v1063
        %v1072 = vadd.f32 %v1050, %v1063
        %v1073 = vadd.f32 %v1051, %v1063
        %v1074 = vadd.f32 %v1052, %v1063
        %v1075 = vadd.f32 %v1053, %v1063
        %v1076 = vadd.f32 %v1054, %v1063
        %v1077 = vadd.f32 %v1055, %v1063
        %v1078 = vadd.f32 %v1056, %v1063
        %v1079 = vadd.f32 %v1057, %v1063
        %v1080 = vadd.f32 %v1058, %v1063
        %v1081 = vmax.f32 %v1065, 0.0
        %v1082 = vmax.f32 %v1066, 0.0
        %v1083 = vmax.f32 %v1067, 0.0
        %v1084 = vmax.f32 %v1068, 0.0
        %v1085 = vmax.f32 %v1069, 0.0
        %v1086 = vmax.f32 %v1070, 0.0
        %v1087 = vmax.f32 %v1071, 0.0
        %v1088 = vmax.f32 %v1072, 0.0
        %v1089 = vmax.f32 %v1073, 0.0
        %v1090 = vmax.f32 %v1074, 0.0
        %v1091 = vmax.f32 %v1075, 0.0
        %v1092 = vmax.f32 %v1076, 0.0
        %v1093 = vmax.f32 %v1077, 0.0
        %v1094 = vmax.f32 %v1078, 0.0
        %v1095 = vmax.f32 %v1079, 0.0
        %v1096 = vmax.f32 %v1080, 0.0
        %v1097 = vadd.f32 %v1081, %v1082
        %v1098 = vadd.f32 %v1097, %v1083
        %v1099 = vadd.f32 %v1098, %v1084
        %v1100 = vadd.f32 %v1099, %v1085
        %v1101 = vadd.f32 %v1100, %v1086
        %v1102 = vadd.f32 %v1101, %v1087
        %v1103 = vadd.f32 %v1102, %v1088
        %v1104 = vadd.f32 %v1103, %v1089
        %v1105 = vadd.f32 %v1104, %v1090
        %v1106 = vadd.f32 %v1105, %v1091
        %v1107 = vadd.f32 %v1106, %v1092
        %v1108 = vadd.f32 %v1107, %v1093
        %v1109 = vadd.f32 %v1108, %v1094
        %v1110 = vadd.f32 %v1109, %v1095
        %v1111 = vadd.f32 %v1110, %v1096
        %v1112 = vld [vmem:[#allocation2] sm:$0xff]
        %v1113 = vadd.f32 %v1112, %v1111
        %1114 = vst [vmem:[#allocation2] sm:$0xff] %v1113
        // Predicated region
        $region49: #{tpu_custom_call.1} parent=35 // pred_check
          %p1115 = pneg %p244
        $region50: #{tpu_custom_call.1} parent=35 // pred_check_branch
          %1117 = sbr.rel (%p1115) target = $region52
        $region51: #{tpu_custom_call.1} parent=35 // pred_region
          %v1118 = vld [vmem:[#allocation2] sm:$0xff]
          %1119 = vadd.xlane.f32.xlu0 %v1118
          %v1120 = vpop.xlane.xlu0 %1119
          %v1121 = vmul.f32 %v1120, 0.00048828125
          %v1122 = vld [vmem:[#allocation5] sm:$0xff]
          %v1123 = vld [vmem:[%s3] sm:$0xff]
          %1125 = vrot.lane.b32.xlu0 %v1123, 127
          %v1126 = vpop.permute.xlu0 %1125
          %vm1128 = vcmask 64512
          %v1130 = vsel %vm1128, %v1122, 0
          %1132 = vmatprep.subr.mxu0 0.0
          %1133 = vmatpush1.msra.mxu0 %v1121
          %1134 = vmatprep.subr.mxu0 0.0
          %1135 = vmatpush1.msra.mxu0 0.0
          %1136 = vmatprep.subr.mxu0 0.0
          %1137 = vmatpush1.msra.mxu0 0.0
          %1138 = vmatprep.subr.mxu0 0.0
          %1139 = vmatpush1.msra.mxu0 0.0
          %1140 = vmatprep.subr.mxu0 0.0
          %1141 = vmatpush1.msra.mxu0 0.0
          %1142 = vmatprep.subr.mxu0 0.0
          %1143 = vmatpush1.msra.mxu0 0.0
          %1144 = vmatprep.subr.mxu0 0.0
          %1145 = vmatpush1.msra.mxu0 0.0
          %1146 = vmatprep.subr.mxu0 0.0
          %1147 = vmatpush1.msra.mxu0 0.0
          %1148 = vmatprep.subr.mxu0 0.0
          %1149 = vmatpush1.msra.mxu0 0.0
          %1150 = vmatprep.subr.mxu0 0.0
          %1151 = vmatpush1.msra.mxu0 0.0
          %1152 = vmatprep.subr.mxu0 0.0
          %1153 = vmatpush1.msra.mxu0 0.0
          %1154 = vmatprep.subr.mxu0 0.0
          %1155 = vmatpush1.msra.mxu0 0.0
          %1156 = vmatprep.subr.mxu0 0.0
          %1157 = vmatpush1.msra.mxu0 0.0
          %1158 = vmatprep.subr.mxu0 0.0
          %1159 = vmatpush1.msra.mxu0 0.0
          %1160 = vmatprep.subr.mxu0 0.0
          %1161 = vmatpush1.msra.mxu0 0.0
          %1162 = vmatprep.subr.mxu0 0.0
          %1163 = vmatpush1.msra.mxu0 0.0
          %1164 = vmatprep.subr.mxu0 0.0
          %1165 = vmatpush1.msra.mxu0 0.0
          %1166 = vmatprep.subr.mxu0 0.0
          %1167 = vmatpush1.msra.mxu0 0.0
          %1168 = vmatprep.subr.mxu0 0.0
          %1169 = vmatpush1.msra.mxu0 0.0
          %1170 = vmatprep.subr.mxu0 0.0
          %1171 = vmatpush1.msra.mxu0 0.0
          %1172 = vmatprep.subr.mxu0 0.0
          %1173 = vmatpush1.msra.mxu0 0.0
          %1174 = vmatprep.subr.mxu0 0.0
          %1175 = vmatpush1.msra.mxu0 0.0
          %1176 = vmatprep.subr.mxu0 0.0
          %1177 = vmatpush1.msra.mxu0 0.0
          %1178 = vmatprep.subr.mxu0 0.0
          %1179 = vmatpush1.msra.mxu0 0.0
          %1180 = vmatprep.subr.mxu0 0.0
          %1181 = vmatpush1.msra.mxu0 0.0
          %1182 = vmatprep.subr.mxu0 0.0
          %1183 = vmatpush1.msra.mxu0 0.0
          %1184 = vmatprep.subr.mxu0 0.0
          %1185 = vmatpush1.msra.mxu0 0.0
          %1186 = vmatprep.subr.mxu0 0.0
          %1187 = vmatpush1.msra.mxu0 0.0
          %1188 = vmatprep.subr.mxu0 0.0
          %1189 = vmatpush1.msra.mxu0 0.0
          %1190 = vmatprep.subr.mxu0 0.0
          %1191 = vmatpush1.msra.mxu0 0.0
          %1192 = vmatprep.subr.mxu0 0.0
          %1193 = vmatpush1.msra.mxu0 0.0
          %1194 = vmatprep.subr.mxu0 0.0
          %1195 = vmatpush1.msra.mxu0 0.0
          %1196 = vmatprep.mubr.f32.mxu0 0.0
          %1197 = vmatmul.mubr.f32.gmra.mrb[0].mxu0 %v1130
          %v1198 = vpop.f32.mrb[0].mxu0
          %v1199 = vadd.f32 %v1126, %v1198
          %v1200 = vpop.f32.mrb[0].mxu0
          %1201 = vdwg.mxu0
          %v1202 = vmax.f32 %v1199, 0.0
          %s1203 = scalar_lea.vmem [#allocation5], 8
          %v1204 = vld [vmem:[%s1203] sm:$0xff]
          %1205 = vrot.lane.b32.xlu0 %v1123, 126
          %v1206 = vpop.permute.xlu0 %1205
          %v1209 = vsel %vm1128, %v1204, 0
          %1211 = vmatprep.subr.mxu0 0.0
          %1212 = vmatpush1.msra.mxu0 %v1202
          %1213 = vmatprep.subr.mxu0 0.0
          %1214 = vmatpush1.msra.mxu0 0.0
          %1215 = vmatprep.subr.mxu0 0.0
          %1216 = vmatpush1.msra.mxu0 0.0
          %1217 = vmatprep.subr.mxu0 0.0
          %1218 = vmatpush1.msra.mxu0 0.0
          %1219 = vmatprep.subr.mxu0 0.0
          %1220 = vmatpush1.msra.mxu0 0.0
          %1221 = vmatprep.subr.mxu0 0.0
          %1222 = vmatpush1.msra.mxu0 0.0
          %1223 = vmatprep.subr.mxu0 0.0
          %1224 = vmatpush1.msra.mxu0 0.0
          %1225 = vmatprep.subr.mxu0 0.0
          %1226 = vmatpush1.msra.mxu0 0.0
          %1227 = vmatprep.subr.mxu0 0.0
          %1228 = vmatpush1.msra.mxu0 0.0
          %1229 = vmatprep.subr.mxu0 0.0
          %1230 = vmatpush1.msra.mxu0 0.0
          %1231 = vmatprep.subr.mxu0 0.0
          %1232 = vmatpush1.msra.mxu0 0.0
          %1233 = vmatprep.subr.mxu0 0.0
          %1234 = vmatpush1.msra.mxu0 0.0
          %1235 = vmatprep.subr.mxu0 0.0
          %1236 = vmatpush1.msra.mxu0 0.0
          %1237 = vmatprep.subr.mxu0 0.0
          %1238 = vmatpush1.msra.mxu0 0.0
          %1239 = vmatprep.subr.mxu0 0.0
          %1240 = vmatpush1.msra.mxu0 0.0
          %1241 = vmatprep.subr.mxu0 0.0
          %1242 = vmatpush1.msra.mxu0 0.0
          %1243 = vmatprep.subr.mxu0 0.0
          %1244 = vmatpush1.msra.mxu0 0.0
          %1245 = vmatprep.subr.mxu0 0.0
          %1246 = vmatpush1.msra.mxu0 0.0
          %1247 = vmatprep.subr.mxu0 0.0
          %1248 = vmatpush1.msra.mxu0 0.0
          %1249 = vmatprep.subr.mxu0 0.0
          %1250 = vmatpush1.msra.mxu0 0.0
          %1251 = vmatprep.subr.mxu0 0.0
          %1252 = vmatpush1.msra.mxu0 0.0
          %1253 = vmatprep.subr.mxu0 0.0
          %1254 = vmatpush1.msra.mxu0 0.0
          %1255 = vmatprep.subr.mxu0 0.0
          %1256 = vmatpush1.msra.mxu0 0.0
          %1257 = vmatprep.subr.mxu0 0.0
          %1258 = vmatpush1.msra.mxu0 0.0
          %1259 = vmatprep.subr.mxu0 0.0
          %1260 = vmatpush1.msra.mxu0 0.0
          %1261 = vmatprep.subr.mxu0 0.0
          %1262 = vmatpush1.msra.mxu0 0.0
          %1263 = vmatprep.subr.mxu0 0.0
          %1264 = vmatpush1.msra.mxu0 0.0
          %1265 = vmatprep.subr.mxu0 0.0
          %1266 = vmatpush1.msra.mxu0 0.0
          %1267 = vmatprep.subr.mxu0 0.0
          %1268 = vmatpush1.msra.mxu0 0.0
          %1269 = vmatprep.subr.mxu0 0.0
          %1270 = vmatpush1.msra.mxu0 0.0
          %1271 = vmatprep.subr.mxu0 0.0
          %1272 = vmatpush1.msra.mxu0 0.0
          %1273 = vmatprep.subr.mxu0 0.0
          %1274 = vmatpush1.msra.mxu0 0.0
          %1275 = vmatprep.mubr.f32.mxu0 0.0
          %1276 = vmatmul.mubr.f32.gmra.mrb[0].mxu0 %v1209
          %v1277 = vpop.f32.mrb[0].mxu0
          %v1278 = vadd.f32 %v1206, %v1277
          %v1279 = vpop.f32.mrb[0].mxu0
          %1280 = vdwg.mxu0
          %v1281 = vmax.f32 %v1278, 0.0
          %s1282 = scalar_lea.vmem [#allocation5], 16
          %v1283 = vld [vmem:[%s1282] sm:$0xff]
          %1284 = vrot.lane.b32.xlu0 %v1123, 125
          %v1285 = vpop.permute.xlu0 %1284
          %v1288 = vsel %vm1128, %v1283, 0
          %1290 = vmatprep.subr.mxu0 0.0
          %1291 = vmatpush1.msra.mxu0 %v1281
          %1292 = vmatprep.subr.mxu0 0.0
          %1293 = vmatpush1.msra.mxu0 0.0
          %1294 = vmatprep.subr.mxu0 0.0
          %1295 = vmatpush1.msra.mxu0 0.0
          %1296 = vmatprep.subr.mxu0 0.0
          %1297 = vmatpush1.msra.mxu0 0.0
          %1298 = vmatprep.subr.mxu0 0.0
          %1299 = vmatpush1.msra.mxu0 0.0
          %1300 = vmatprep.subr.mxu0 0.0
          %1301 = vmatpush1.msra.mxu0 0.0
          %1302 = vmatprep.subr.mxu0 0.0
          %1303 = vmatpush1.msra.mxu0 0.0
          %1304 = vmatprep.subr.mxu0 0.0
          %1305 = vmatpush1.msra.mxu0 0.0
          %1306 = vmatprep.subr.mxu0 0.0
          %1307 = vmatpush1.msra.mxu0 0.0
          %1308 = vmatprep.subr.mxu0 0.0
          %1309 = vmatpush1.msra.mxu0 0.0
          %1310 = vmatprep.subr.mxu0 0.0
          %1311 = vmatpush1.msra.mxu0 0.0
          %1312 = vmatprep.subr.mxu0 0.0
          %1313 = vmatpush1.msra.mxu0 0.0
          %1314 = vmatprep.subr.mxu0 0.0
          %1315 = vmatpush1.msra.mxu0 0.0
          %1316 = vmatprep.subr.mxu0 0.0
          %1317 = vmatpush1.msra.mxu0 0.0
          %1318 = vmatprep.subr.mxu0 0.0
          %1319 = vmatpush1.msra.mxu0 0.0
          %1320 = vmatprep.subr.mxu0 0.0
          %1321 = vmatpush1.msra.mxu0 0.0
          %1322 = vmatprep.subr.mxu0 0.0
          %1323 = vmatpush1.msra.mxu0 0.0
          %1324 = vmatprep.subr.mxu0 0.0
          %1325 = vmatpush1.msra.mxu0 0.0
          %1326 = vmatprep.subr.mxu0 0.0
          %1327 = vmatpush1.msra.mxu0 0.0
          %1328 = vmatprep.subr.mxu0 0.0
          %1329 = vmatpush1.msra.mxu0 0.0
          %1330 = vmatprep.subr.mxu0 0.0
          %1331 = vmatpush1.msra.mxu0 0.0
          %1332 = vmatprep.subr.mxu0 0.0
          %1333 = vmatpush1.msra.mxu0 0.0
          %1334 = vmatprep.subr.mxu0 0.0
          %1335 = vmatpush1.msra.mxu0 0.0
          %1336 = vmatprep.subr.mxu0 0.0
          %1337 = vmatpush1.msra.mxu0 0.0
          %1338 = vmatprep.subr.mxu0 0.0
          %1339 = vmatpush1.msra.mxu0 0.0
          %1340 = vmatprep.subr.mxu0 0.0
          %1341 = vmatpush1.msra.mxu0 0.0
          %1342 = vmatprep.subr.mxu0 0.0
          %1343 = vmatpush1.msra.mxu0 0.0
          %1344 = vmatprep.subr.mxu0 0.0
          %1345 = vmatpush1.msra.mxu0 0.0
          %1346 = vmatprep.subr.mxu0 0.0
          %1347 = vmatpush1.msra.mxu0 0.0
          %1348 = vmatprep.subr.mxu0 0.0
          %1349 = vmatpush1.msra.mxu0 0.0
          %1350 = vmatprep.subr.mxu0 0.0
          %1351 = vmatpush1.msra.mxu0 0.0
          %1352 = vmatprep.subr.mxu0 0.0
          %1353 = vmatpush1.msra.mxu0 0.0
          %1354 = vmatprep.mubr.f32.mxu0 0.0
          %1355 = vmatmul.mubr.f32.gmra.mrb[0].mxu0 %v1288
          %v1356 = vpop.f32.mrb[0].mxu0
          %v1357 = vadd.f32 %v1285, %v1356
          %v1358 = vpop.f32.mrb[0].mxu0
          %1359 = vdwg.mxu0
          %v1360 = vmax.f32 %v1357, 0.0
          %v1361 = vand.u32 2147483647, %v1357
          %v1362 = vsub.f32 0.0, %v1361
          %v1363 = vmul.f32 %v1362, 1.442695
          %v1364 = vpow.pop %v1363
          %v1365 = vadd.f32 %v1364, 1.0
          %v1366 = vlog2.pop %v1365
          %v1367 = vmul.f32 %v1366, 0.6931472
          %v1368 = vadd.f32 %v1360, %v1367
          %v1369 = vadd.f32 %v1368, 1e-06
          %vm1370 = vcmask 0
          %1371 = vst.msk [vmem:[%s243] sm:$0x1] %vm1370, %v1369
        $region52: #{tpu_custom_call.1} parent=35 // pred_fallthru
          _
        %p1372 = scmp.lt.s32.totalorder %s23, 1
        %s1373 = scalar_select %p1372, %s23, 1
        %s1374 = scalar_lea.vmem %s4, %s1373
        // Predicated region
        $region53: #{tpu_custom_call.1} parent=35 // pred_check
          %p1375 = pneg %p140
        $region54: #{tpu_custom_call.1} parent=35 // pred_check_branch
          %1377 = sbr.rel (%p1375) target = $region56
        $region55: #{tpu_custom_call.1} parent=35 // pred_region
          _
        $region56: #{tpu_custom_call.1} parent=35 // pred_fallthru
          _
      $region36: #{tpu_custom_call.1} parent=5 // pred_fallthru
        _
      %p1378 = scmp.le.s32.totalorder 2, %s14
      // Predicated region
      $region57: #{tpu_custom_call.1} parent=5 // pred_check
        %p1379 = pneg %p1378
      $region58: #{tpu_custom_call.1} parent=5 // pred_check_branch
        %1381 = sbr.rel (%p1379) target = $region60
      $region59: #{tpu_custom_call.1} parent=5 // pred_region
        %s1382 = ssub.s32 %s14, 2
        // Predicated region
        $region61: #{tpu_custom_call.1} parent=59 // pred_check
          %p1383 = pneg %p146
        $region62: #{tpu_custom_call.1} parent=59 // pred_check_branch
          %1385 = sbr.rel (%p1383) target = $region64
        $region63: #{tpu_custom_call.1} parent=59 // pred_region
          %p1386 = scmp.lt.s32.totalorder %s25, 1
          %s1387 = scalar_select %p1386, %s25, 1
          %s1388 = scalar_lea.vmem %s4, %s1387
        $region64: #{tpu_custom_call.1} parent=59 // pred_fallthru
          _
      $region60: #{tpu_custom_call.1} parent=5 // pred_fallthru
        _
    $region6: #{tpu_custom_call.1} parent=1 // loop_footer
      %s18 = sadd.s32 1, %s14
    $region7: #{tpu_custom_call.1} parent=1 // loop_footer_branch
      %13 = sbr.rel target = $region3
    $region8: #{tpu_custom_call.1} parent=1 // loop_exit
      _
    %1389 = vsyncpa [#allocation4], 1
    %s1390 = scalar_lea.sflag [#allocation4], 1
    %1391 = vsyncpa %s1390, 1
    %1392 = vsyncpa [#allocation6], 1

</llo_original>
